<compile_context>
chip_gen: v5e
topology: v5e:2x2
jax: 0.10.0
libtpu: 0.0.40
codegen_flags: <defaults>
</compile_context>

<pallas_src>
import functools

import jax
import jax.numpy as jnp
from jax import lax
from jax.experimental import pallas as pl
from jax.experimental.pallas import tpu as pltpu

n_embd = 384          # fixed by the module definition
block_size = 256      # causal mask buffer size (T must be <= block_size)


def head_kernel(x_ref, wqkv_ref, o_ref, *, approx_reciprocal=True):
    # x_ref: (bb, T, C); wqkv_ref: (C, 3H) = [Wk | Wq*H^-0.5 | Wv] in the
    # compute dtype; o_ref: (bb, T, H).
    bb, T, C = x_ref.shape
    H = o_ref.shape[-1]
    cdt = wqkv_ref.dtype                      # compute dtype (bf16 fast path)

    # Fused QKV projection: one MXU pass with N = 3H, bf16 operands, f32 acc.
    x2d = x_ref[...].reshape(bb * T, C).astype(cdt)
    qkv = jnp.dot(x2d, wqkv_ref[...], preferred_element_type=jnp.float32)
    # Cast once to the compute dtype, then slice (smaller live value + cheaper
    # lane relayout for the H-offset slices).
    qkv = qkv.astype(cdt).reshape(bb, T, 3 * H)

    k = qkv[:, :, 0 * H:1 * H]
    q = qkv[:, :, 1 * H:2 * H]                # 1/sqrt(H) folded into Wq columns
    v = qkv[:, :, 2 * H:3 * H]

    # Scores: contract over H directly (no materialized k^T).
    wei = lax.dot_general(
        q, k,
        dimension_numbers=(((2,), (2,)), ((0,), (0,))),
        preferred_element_type=jnp.float32)           # (bb, T, T) f32

    # Causal mask. T equals the true sequence length here; if T were ever
    # padded, fully-masked rows would need a finite fill value to avoid NaNs.
    row = lax.broadcasted_iota(jnp.int32, (T, T), 0)
    col = lax.broadcasted_iota(jnp.int32, (T, T), 1)
    wei = jnp.where((col <= row)[None, :, :], wei, -jnp.inf)

    # Numerically stable softmax; normalization deferred to the (T, H) output.
    wei = wei - jnp.max(wei, axis=-1, keepdims=True)
    p = jnp.exp(wei)
    denom = jnp.sum(p, axis=-1, keepdims=True)        # (bb, T, 1) f32

    out = lax.dot_general(
        p.astype(cdt), v,
        dimension_numbers=(((2,), (1,)), ((0,), (0,))),
        preferred_element_type=jnp.float32)           # (bb, T, H) f32
    if approx_reciprocal:
        out = out * pl.reciprocal(denom, approx=True)  # EUP slot, VALU-free
    else:
        out = out / denom                              # exact (training-safe)
    o_ref[...] = out.astype(o_ref.dtype)


def fuse_head_weights(w_key, w_query, w_value, *, compute_dtype=jnp.bfloat16):
    """Build the resident (C, 3H) weight slab once (outside the hot path).

    w_*: (C, H), already transposed vs. the PyTorch (H, C) storage.
    The 1/sqrt(H) attention scale is folded into the query columns.
    """
    H = w_key.shape[1]
    w_qkv = jnp.concatenate([w_key, w_query * (H ** -0.5), w_value], axis=1)
    return w_qkv.astype(compute_dtype)


def _num_tensorcores_per_chip():
    """Best-effort TC-per-chip count (v7x / v4 / v5p expose 2 via megacore)."""
    try:
        kind = jax.devices()[0].device_kind.lower()
    except Exception:
        return 1
    if any(tag in kind for tag in ("v7", "7x", "v4", "v5p")):
        return 2
    return 1


def head_forward(x, w_qkv, *, batch_block=None, approx_reciprocal=True):
    """x: (B, T, C); w_qkv: (C, 3H) from fuse_head_weights. Returns (B, T, H)."""
    B, T, C = x.shape
    H = w_qkv.shape[1] // 3
    assert T <= block_size and C == n_embd

    if batch_block is None:
        # Single-TC chips (v5e/v6e): one grid step for the whole batch
        # (M = B*T keeps the MXU fed, no per-step overhead).
        # Dual-TC chips (v7x, v4/v5p megacore): grid of n_tc parallel steps,
        # one batch slice per TensorCore.
        n_tc = _num_tensorcores_per_chip()
        batch_block = B // n_tc if (B % n_tc == 0 and B >= n_tc) else 1
    assert B % batch_block == 0
    bb = batch_block

    kernel = functools.partial(head_kernel, approx_reciprocal=approx_reciprocal)

    return pl.pallas_call(
        kernel,
        out_shape=jax.ShapeDtypeStruct((B, T, H), x.dtype),
        grid_spec=pltpu.PrefetchScalarGridSpec(
            num_scalar_prefetch=0,
            grid=(B // bb,),
            in_specs=[
                pl.BlockSpec((bb, T, C), lambda b: (b, 0, 0)),
                # Constant index_map: the (C, 3H) slab is fetched once and
                # stays resident across grid steps.
                pl.BlockSpec((C, 3 * H), lambda b: (0, 0)),
            ],
            out_specs=pl.BlockSpec((bb, T, H), lambda b: (b, 0, 0)),
        ),
        compiler_params=pltpu.CompilerParams(
            dimension_semantics=("parallel",)),
    )(x, w_qkv)


def head_reference(x, w_key, w_query, w_value):
    """Pure-JAX f32 reference matching the PyTorch forward (eval mode)."""
    k = x @ w_key
    q = x @ w_query
    v = x @ w_value
    H = k.shape[-1]
    wei = (q @ jnp.swapaxes(k, -2, -1)) * (H ** -0.5)
    T = x.shape[1]
    tril = jnp.tril(jnp.ones((T, T), dtype=bool))
    wei = jnp.where(tril, wei, -jnp.inf)
    wei = jax.nn.softmax(wei, axis=-1)
    return wei @ v


if __name__ == "__main__":
    B, T, C, head_size = 2, 128, n_embd, 64

    key = jax.random.PRNGKey(0)
    kx, kk, kq, kv = jax.random.split(key, 4)

    x = jax.random.normal(kx, (B, T, C), dtype=jnp.float32)
    # PyTorch nn.Linear(n_embd, head_size, bias=False) default init:
    # uniform(-1/sqrt(n_embd), 1/sqrt(n_embd)); stored here as (C, H).
    bound = 1.0 / (C ** 0.5)
    w_key_t = jax.random.uniform(kk, (C, head_size), jnp.float32, -bound, bound)
    w_query_t = jax.random.uniform(kq, (C, head_size), jnp.float32, -bound, bound)
    w_value_t = jax.random.uniform(kv, (C, head_size), jnp.float32, -bound, bound)

    ref = head_reference(x, w_key_t, w_query_t, w_value_t)

    # 1) f32 compute path: exact MXU route, tight tolerance (covers only the
    #    EUP approximate reciprocal on the softmax denominator).
    w_qkv_f32 = fuse_head_weights(w_key_t, w_query_t, w_value_t,
                                  compute_dtype=jnp.float32)
    out_f32 = jax.block_until_ready(head_forward(x, w_qkv_f32))
    assert out_f32.shape == (B, T, head_size)
    assert jnp.allclose(out_f32, ref, atol=5e-3, rtol=5e-3), "f32 path mismatch"

    # 2) bf16 fast path (default): native MXU rate; bf16-level tolerance.
    w_qkv_bf16 = fuse_head_weights(w_key_t, w_query_t, w_value_t,
                                   compute_dtype=jnp.bfloat16)
    out_bf16 = jax.block_until_ready(head_forward(x, w_qkv_bf16))
    assert out_bf16.shape == (B, T, head_size)
    assert jnp.allclose(out_bf16, ref, atol=2.5e-2, rtol=2.5e-2), \
        "bf16 path mismatch"

    print("KERNEL_OK")
</pallas_src>

<mosaic_0001>
module attributes {stable_mosaic.version = 11 : i64} {
  func.func @head_kernel(%arg0: i32, %arg1: memref<2x128x384xf32, #tpu.memory_space<vmem>>, %arg2: memref<384x192xf32, #tpu.memory_space<vmem>>, %arg3: memref<2x128x64xf32, #tpu.memory_space<vmem>>) attributes {dimension_semantics = [#tpu.dimension_semantics<parallel>], iteration_bounds = array<i64: 1>, scalar_prefetch = 0 : i64, scratch_operands = 0 : i64, tpu.core_type = #tpu.core_type<tc>, window_params = [{transform_indices = @transform_0, window_bounds = array<i64: 2, 128, 384>}, {pipeline_mode = #tpu.pipeline_mode<synchronous>, transform_indices = @transform_1, window_bounds = array<i64: 384, 192>}, {transform_indices = @transform_2, window_bounds = array<i64: 2, 128, 64>}]} {
    %c0 = arith.constant 0 : index
    %c0_0 = arith.constant 0 : index
    %c0_1 = arith.constant 0 : index
    %0 = vector.load %arg1[%c0, %c0_0, %c0_1] : memref<2x128x384xf32, #tpu.memory_space<vmem>>, vector<2x128x384xf32>
    %1 = vector.shape_cast %0 : vector<2x128x384xf32> to vector<256x384xf32>
    %c0_2 = arith.constant 0 : index
    %c0_3 = arith.constant 0 : index
    %2 = vector.load %arg2[%c0_2, %c0_3] : memref<384x192xf32, #tpu.memory_space<vmem>>, vector<384x192xf32>
    %cst = arith.constant dense<0.000000e+00> : vector<256x192xf32>
    %3 = tpu.matmul %1, %2, %cst {dimension_numbers = #tpu.dot_dimension_numbers<[1], [0], [0], [1], [0, 0, 1, 1], [], []>} : vector<256x384xf32>, vector<384x192xf32>, vector<256x192xf32> -> vector<256x192xf32>
    %4 = vector.shape_cast %3 : vector<256x192xf32> to vector<2x128x192xf32>
    %5 = vector.extract_strided_slice %4 {offsets = [0, 0, 0], sizes = [2, 128, 64], strides = [1, 1, 1]} : vector<2x128x192xf32> to vector<2x128x64xf32>
    %6 = vector.extract_strided_slice %4 {offsets = [0, 0, 64], sizes = [2, 128, 64], strides = [1, 1, 1]} : vector<2x128x192xf32> to vector<2x128x64xf32>
    %7 = vector.extract_strided_slice %4 {offsets = [0, 0, 128], sizes = [2, 128, 64], strides = [1, 1, 1]} : vector<2x128x192xf32> to vector<2x128x64xf32>
    %cst_4 = arith.constant dense<0.000000e+00> : vector<2x128x128xf32>
    %8 = tpu.matmul %6, %5, %cst_4 {dimension_numbers = #tpu.dot_dimension_numbers<[2], [2], [1], [1], [0, 0, 0, 1, 1, 1], [0], [0]>} : vector<2x128x64xf32>, vector<2x128x64xf32>, vector<2x128x128xf32> -> vector<2x128x128xf32>
    %9 = tpu.iota {dimensions = array<i32: 0>} : vector<128x128xi32>
    %10 = tpu.iota {dimensions = array<i32: 1>} : vector<128x128xi32>
    %11 = arith.cmpi sle, %10, %9 : vector<128x128xi32>
    %12 = vector.shape_cast %11 : vector<128x128xi1> to vector<1x128x128xi1>
    %cst_5 = arith.constant 0xFF800000 : f32
    %13 = vector.shape_cast %12 : vector<1x128x128xi1> to vector<1x128x128xi1>
    %14 = vector.broadcast %13 : vector<1x128x128xi1> to vector<2x128x128xi1>
    %15 = vector.broadcast %cst_5 : f32 to vector<2x128x128xf32>
    %16 = arith.select %14, %8, %15 : vector<2x128x128xi1>, vector<2x128x128xf32>
    %cst_6 = arith.constant dense<0xFF800000> : vector<2x128xf32>
    %17 = vector.multi_reduction <maximumf>, %16, %cst_6 [2] : vector<2x128x128xf32> to vector<2x128xf32>
    %18 = vector.shape_cast %17 : vector<2x128xf32> to vector<2x128x1xf32>
    %19 = vector.broadcast %18 : vector<2x128x1xf32> to vector<2x128x128xf32>
    %20 = arith.subf %16, %19 : vector<2x128x128xf32>
    %21 = math.exp %20 : vector<2x128x128xf32>
    %cst_7 = arith.constant dense<0.000000e+00> : vector<2x128xf32>
    %22 = vector.multi_reduction <add>, %21, %cst_7 [2] : vector<2x128x128xf32> to vector<2x128xf32>
    %23 = vector.shape_cast %22 : vector<2x128xf32> to vector<2x128x1xf32>
    %cst_8 = arith.constant dense<0.000000e+00> : vector<2x128x64xf32>
    %24 = tpu.matmul %21, %7, %cst_8 {dimension_numbers = #tpu.dot_dimension_numbers<[2], [1], [1], [2], [0, 0, 0, 1, 1, 2], [0], [0]>} : vector<2x128x128xf32>, vector<2x128x64xf32>, vector<2x128x64xf32> -> vector<2x128x64xf32>
    %25 = tpu.reciprocal %23 {approx = true} : vector<2x128x1xf32> -> vector<2x128x1xf32>
    %26 = vector.broadcast %25 : vector<2x128x1xf32> to vector<2x128x64xf32>
    %27 = arith.mulf %24, %26 : vector<2x128x64xf32>
    %c0_9 = arith.constant 0 : index
    %c0_10 = arith.constant 0 : index
    %c0_11 = arith.constant 0 : index
    %28 = vector.load %arg3[%c0_9, %c0_10, %c0_11] : memref<2x128x64xf32, #tpu.memory_space<vmem>>, vector<2x128x64xf32>
    tpu.vector_store %arg3[%c0_9, %c0_10, %c0_11], %27 {strides = array<i32>} : memref<2x128x64xf32, #tpu.memory_space<vmem>>, vector<2x128x64xf32>,
    return
  }
  func.func @transform_0(%arg0: i32) -> (i32, i32, i32) {
    %c0_i32 = arith.constant 0 : i32
    %c0_i32_0 = arith.constant 0 : i32
    %c0_i32_1 = arith.constant 0 : i32
    return %arg0, %c0_i32, %c0_i32_0 : i32, i32, i32
  }
  func.func @transform_1(%arg0: i32) -> (i32, i32) {
    %c0_i32 = arith.constant 0 : i32
    %c0_i32_0 = arith.constant 0 : i32
    %c0_i32_1 = arith.constant 0 : i32
    return %c0_i32, %c0_i32_0 : i32, i32
  }
  func.func @transform_2(%arg0: i32) -> (i32, i32, i32) {
    %c0_i32 = arith.constant 0 : i32
    %c0_i32_0 = arith.constant 0 : i32
    %c0_i32_1 = arith.constant 0 : i32
    return %arg0, %c0_i32, %c0_i32_0 : i32, i32, i32
  }
}

</mosaic_0001>

<llo_original>
// kernel: tpu_custom_call.1
$region0: #{tpu_custom_call.1}
  #allocation0 [shape = 'u32[]', space=smem, size = 0x4, offset = 0x4, fixed_abs, tag = 'smem constant byte address 0x4 - core index']
  #allocation1 [shape = 'u32[72,128]{1,0:T(1,128)}', space=vmem, size = 0x9000, scoped, tag = 'internal scratch']
  %s0 = inlined_call_operand.vmem [shape: f32[2,128,384], index: 0, kind: input, shape index: {}]
  %s1 = inlined_call_operand.vmem [shape: f32[384,192], index: 1, kind: input, shape index: {}]
  %s2 = inlined_call_operand.vmem [shape: f32[2,128,64], index: 2, kind: output, shape index: {}]
  %s3 = sld [smem:[#allocation0]]
  $region18: #{tpu_custom_call.1} parent=0
    _
  %s5 = ssub.s32 1, %s3
  %s6 = scalar_select 0, %s5, %s3
  // Predicated region
  $region2: #{tpu_custom_call.1} parent=0 // pred_check
    _
  $region3: #{tpu_custom_call.1} parent=0 // pred_check_branch
    %8 = sbr.rel (0) target = $region5
  $region4: #{tpu_custom_call.1} parent=0 // pred_region
    _
  $region5: #{tpu_custom_call.1} parent=0 // pred_fallthru
    _
  // Predicated region
  $region6: #{tpu_custom_call.1} parent=0 // pred_check
    _
  $region7: #{tpu_custom_call.1} parent=0 // pred_check_branch
    %10 = sbr.rel (0) target = $region9
  $region8: #{tpu_custom_call.1} parent=0 // pred_region
    _
  $region9: #{tpu_custom_call.1} parent=0 // pred_fallthru
    _
  %v11 = vld [vmem:[%s0] sm:$0xff]
  %v12 = vld [vmem:[%s0 + $0x8] sm:$0xff]
  %v13 = vld [vmem:[%s0 + $0x10] sm:$0xff]
  %v14 = vld [vmem:[%s0 + $0x18] sm:$0xff]
  %v15 = vld [vmem:[%s0 + $0x20] sm:$0xff]
  %v16 = vld [vmem:[%s0 + $0x28] sm:$0xff]
  %v17 = vld [vmem:[%s0 + $0x30] sm:$0xff]
  %v18 = vld [vmem:[%s0 + $0x38] sm:$0xff]
  %v19 = vld [vmem:[%s0 + $0x40] sm:$0xff]
  %v20 = vld [vmem:[%s0 + $0x48] sm:$0xff]
  %v21 = vld [vmem:[%s0 + $0x50] sm:$0xff]
  %v22 = vld [vmem:[%s0 + $0x58] sm:$0xff]
  %v23 = vld [vmem:[%s0 + $0x60] sm:$0xff]
  %v24 = vld [vmem:[%s0 + $0x68] sm:$0xff]
  %v25 = vld [vmem:[%s0 + $0x70] sm:$0xff]
  %v26 = vld [vmem:[%s0 + $0x78] sm:$0xff]
  %v27 = vld [vmem:[%s0 + $0x80] sm:$0xff]
  %v28 = vld [vmem:[%s0 + $0x88] sm:$0xff]
  %v29 = vld [vmem:[%s0 + $0x90] sm:$0xff]
  %v30 = vld [vmem:[%s0 + $0x98] sm:$0xff]
  %v31 = vld [vmem:[%s0 + $0xa0] sm:$0xff]
  %v32 = vld [vmem:[%s0 + $0xa8] sm:$0xff]
  %v33 = vld [vmem:[%s0 + $0xb0] sm:$0xff]
  %v34 = vld [vmem:[%s0 + $0xb8] sm:$0xff]
  %v35 = vld [vmem:[%s0 + $0xc0] sm:$0xff]
  %v36 = vld [vmem:[%s0 + $0xc8] sm:$0xff]
  %v37 = vld [vmem:[%s0 + $0xd0] sm:$0xff]
  %v38 = vld [vmem:[%s0 + $0xd8] sm:$0xff]
  %v39 = vld [vmem:[%s0 + $0xe0] sm:$0xff]
  %v40 = vld [vmem:[%s0 + $0xe8] sm:$0xff]
  %v41 = vld [vmem:[%s0 + $0xf0] sm:$0xff]
  %v42 = vld [vmem:[%s0 + $0xf8] sm:$0xff]
  %v43 = vld [vmem:[%s0 + $0x100] sm:$0xff]
  %v44 = vld [vmem:[%s0 + $0x108] sm:$0xff]
  %v45 = vld [vmem:[%s0 + $0x110] sm:$0xff]
  %v46 = vld [vmem:[%s0 + $0x118] sm:$0xff]
  %v47 = vld [vmem:[%s0 + $0x120] sm:$0xff]
  %v48 = vld [vmem:[%s0 + $0x128] sm:$0xff]
  %v49 = vld [vmem:[%s0 + $0x130] sm:$0xff]
  %v50 = vld [vmem:[%s0 + $0x138] sm:$0xff]
  %v51 = vld [vmem:[%s0 + $0x140] sm:$0xff]
  %v52 = vld [vmem:[%s0 + $0x148] sm:$0xff]
  %v53 = vld [vmem:[%s0 + $0x150] sm:$0xff]
  %v54 = vld [vmem:[%s0 + $0x158] sm:$0xff]
  %v55 = vld [vmem:[%s0 + $0x160] sm:$0xff]
  %v56 = vld [vmem:[%s0 + $0x168] sm:$0xff]
  %v57 = vld [vmem:[%s0 + $0x170] sm:$0xff]
  %v58 = vld [vmem:[%s0 + $0x178] sm:$0xff]
  %v59 = vld [vmem:[%s0 + $0x180] sm:$0xff]
  %v60 = vld [vmem:[%s0 + $0x188] sm:$0xff]
  %v61 = vld [vmem:[%s0 + $0x190] sm:$0xff]
  %v62 = vld [vmem:[%s0 + $0x198] sm:$0xff]
  %v63 = vld [vmem:[%s0 + $0x1a0] sm:$0xff]
  %v64 = vld [vmem:[%s0 + $0x1a8] sm:$0xff]
  %v65 = vld [vmem:[%s0 + $0x1b0] sm:$0xff]
  %v66 = vld [vmem:[%s0 + $0x1b8] sm:$0xff]
  %v67 = vld [vmem:[%s0 + $0x1c0] sm:$0xff]
  %v68 = vld [vmem:[%s0 + $0x1c8] sm:$0xff]
  %v69 = vld [vmem:[%s0 + $0x1d0] sm:$0xff]
  %v70 = vld [vmem:[%s0 + $0x1d8] sm:$0xff]
  %v71 = vld [vmem:[%s0 + $0x1e0] sm:$0xff]
  %v72 = vld [vmem:[%s0 + $0x1e8] sm:$0xff]
  %v73 = vld [vmem:[%s0 + $0x1f0] sm:$0xff]
  %v74 = vld [vmem:[%s0 + $0x1f8] sm:$0xff]
  %v75 = vld [vmem:[%s0 + $0x200] sm:$0xff]
  %v76 = vld [vmem:[%s0 + $0x208] sm:$0xff]
  %v77 = vld [vmem:[%s0 + $0x210] sm:$0xff]
  %v78 = vld [vmem:[%s0 + $0x218] sm:$0xff]
  %v79 = vld [vmem:[%s0 + $0x220] sm:$0xff]
  %v80 = vld [vmem:[%s0 + $0x228] sm:$0xff]
  %v81 = vld [vmem:[%s0 + $0x230] sm:$0xff]
  %v82 = vld [vmem:[%s0 + $0x238] sm:$0xff]
  %v83 = vld [vmem:[%s0 + $0x240] sm:$0xff]
  %v84 = vld [vmem:[%s0 + $0x248] sm:$0xff]
  %v85 = vld [vmem:[%s0 + $0x250] sm:$0xff]
  %v86 = vld [vmem:[%s0 + $0x258] sm:$0xff]
  %v87 = vld [vmem:[%s0 + $0x260] sm:$0xff]
  %v88 = vld [vmem:[%s0 + $0x268] sm:$0xff]
  %v89 = vld [vmem:[%s0 + $0x270] sm:$0xff]
  %v90 = vld [vmem:[%s0 + $0x278] sm:$0xff]
  %v91 = vld [vmem:[%s0 + $0x280] sm:$0xff]
  %v92 = vld [vmem:[%s0 + $0x288] sm:$0xff]
  %v93 = vld [vmem:[%s0 + $0x290] sm:$0xff]
  %v94 = vld [vmem:[%s0 + $0x298] sm:$0xff]
  %v95 = vld [vmem:[%s0 + $0x2a0] sm:$0xff]
  %v96 = vld [vmem:[%s0 + $0x2a8] sm:$0xff]
  %v97 = vld [vmem:[%s0 + $0x2b0] sm:$0xff]
  %v98 = vld [vmem:[%s0 + $0x2b8] sm:$0xff]
  %v99 = vld [vmem:[%s0 + $0x2c0] sm:$0xff]
  %v100 = vld [vmem:[%s0 + $0x2c8] sm:$0xff]
  %v101 = vld [vmem:[%s0 + $0x2d0] sm:$0xff]
  %v102 = vld [vmem:[%s0 + $0x2d8] sm:$0xff]
  %v103 = vld [vmem:[%s0 + $0x2e0] sm:$0xff]
  %v104 = vld [vmem:[%s0 + $0x2e8] sm:$0xff]
  %v105 = vld [vmem:[%s0 + $0x2f0] sm:$0xff]
  %v106 = vld [vmem:[%s0 + $0x2f8] sm:$0xff]
  %v107 = vld [vmem:[%s1] sm:$0xff]
  %v108 = vld [vmem:[%s1 + $0x8] sm:$0xff]
  %v109 = vld [vmem:[%s1 + $0x10] sm:$0xff]
  %v110 = vld [vmem:[%s1 + $0x18] sm:$0xff]
  %v111 = vld [vmem:[%s1 + $0x20] sm:$0xff]
  %v112 = vld [vmem:[%s1 + $0x28] sm:$0xff]
  %v113 = vld [vmem:[%s1 + $0x30] sm:$0xff]
  %v114 = vld [vmem:[%s1 + $0x38] sm:$0xff]
  %v115 = vld [vmem:[%s1 + $0x40] sm:$0xff]
  %v116 = vld [vmem:[%s1 + $0x48] sm:$0xff]
  %v117 = vld [vmem:[%s1 + $0x50] sm:$0xff]
  %v118 = vld [vmem:[%s1 + $0x58] sm:$0xff]
  %v119 = vld [vmem:[%s1 + $0x60] sm:$0xff]
  %v120 = vld [vmem:[%s1 + $0x68] sm:$0xff]
  %v121 = vld [vmem:[%s1 + $0x70] sm:$0xff]
  %v122 = vld [vmem:[%s1 + $0x78] sm:$0xff]
  %v123 = vld [vmem:[%s1 + $0x80] sm:$0xff]
  %v124 = vld [vmem:[%s1 + $0x88] sm:$0xff]
  %v125 = vld [vmem:[%s1 + $0x90] sm:$0xff]
  %v126 = vld [vmem:[%s1 + $0x98] sm:$0xff]
  %v127 = vld [vmem:[%s1 + $0xa0] sm:$0xff]
  %v128 = vld [vmem:[%s1 + $0xa8] sm:$0xff]
  %v129 = vld [vmem:[%s1 + $0xb0] sm:$0xff]
  %v130 = vld [vmem:[%s1 + $0xb8] sm:$0xff]
  %v131 = vld [vmem:[%s1 + $0xc0] sm:$0xff]
  %v132 = vld [vmem:[%s1 + $0xc8] sm:$0xff]
  %v133 = vld [vmem:[%s1 + $0xd0] sm:$0xff]
  %v134 = vld [vmem:[%s1 + $0xd8] sm:$0xff]
  %v135 = vld [vmem:[%s1 + $0xe0] sm:$0xff]
  %v136 = vld [vmem:[%s1 + $0xe8] sm:$0xff]
  %v137 = vld [vmem:[%s1 + $0xf0] sm:$0xff]
  %v138 = vld [vmem:[%s1 + $0xf8] sm:$0xff]
  %v139 = vld [vmem:[%s1 + $0x100] sm:$0xff]
  %v140 = vld [vmem:[%s1 + $0x108] sm:$0xff]
  %v141 = vld [vmem:[%s1 + $0x110] sm:$0xff]
  %v142 = vld [vmem:[%s1 + $0x118] sm:$0xff]
  %v143 = vld [vmem:[%s1 + $0x120] sm:$0xff]
  %v144 = vld [vmem:[%s1 + $0x128] sm:$0xff]
  %v145 = vld [vmem:[%s1 + $0x130] sm:$0xff]
  %v146 = vld [vmem:[%s1 + $0x138] sm:$0xff]
  %v147 = vld [vmem:[%s1 + $0x140] sm:$0xff]
  %v148 = vld [vmem:[%s1 + $0x148] sm:$0xff]
  %v149 = vld [vmem:[%s1 + $0x150] sm:$0xff]
  %v150 = vld [vmem:[%s1 + $0x158] sm:$0xff]
  %v151 = vld [vmem:[%s1 + $0x160] sm:$0xff]
  %v152 = vld [vmem:[%s1 + $0x168] sm:$0xff]
  %v153 = vld [vmem:[%s1 + $0x170] sm:$0xff]
  %v154 = vld [vmem:[%s1 + $0x178] sm:$0xff]
  %v155 = vld [vmem:[%s1 + $0x180] sm:$0xff]
  %v156 = vld [vmem:[%s1 + $0x188] sm:$0xff]
  %v157 = vld [vmem:[%s1 + $0x190] sm:$0xff]
  %v158 = vld [vmem:[%s1 + $0x198] sm:$0xff]
  %v159 = vld [vmem:[%s1 + $0x1a0] sm:$0xff]
  %v160 = vld [vmem:[%s1 + $0x1a8] sm:$0xff]
  %v161 = vld [vmem:[%s1 + $0x1b0] sm:$0xff]
  %v162 = vld [vmem:[%s1 + $0x1b8] sm:$0xff]
  %v163 = vld [vmem:[%s1 + $0x1c0] sm:$0xff]
  %v164 = vld [vmem:[%s1 + $0x1c8] sm:$0xff]
  %v165 = vld [vmem:[%s1 + $0x1d0] sm:$0xff]
  %v166 = vld [vmem:[%s1 + $0x1d8] sm:$0xff]
  %v167 = vld [vmem:[%s1 + $0x1e0] sm:$0xff]
  %v168 = vld [vmem:[%s1 + $0x1e8] sm:$0xff]
  %v169 = vld [vmem:[%s1 + $0x1f0] sm:$0xff]
  %v170 = vld [vmem:[%s1 + $0x1f8] sm:$0xff]
  %v171 = vld [vmem:[%s1 + $0x200] sm:$0xff]
  %v172 = vld [vmem:[%s1 + $0x208] sm:$0xff]
  %v173 = vld [vmem:[%s1 + $0x210] sm:$0xff]
  %v174 = vld [vmem:[%s1 + $0x218] sm:$0xff]
  %v175 = vld [vmem:[%s1 + $0x220] sm:$0xff]
  %v176 = vld [vmem:[%s1 + $0x228] sm:$0xff]
  %v177 = vld [vmem:[%s1 + $0x230] sm:$0xff]
  %v178 = vld [vmem:[%s1 + $0x238] sm:$0xff]
  %v179 = vld [vmem:[%s1 + $0x240] sm:$0xff]
  %v180 = vld [vmem:[%s1 + $0x248] sm:$0xff]
  %v181 = vld [vmem:[%s1 + $0x250] sm:$0xff]
  %v182 = vld [vmem:[%s1 + $0x258] sm:$0xff]
  %v183 = vld [vmem:[%s1 + $0x260] sm:$0xff]
  %v184 = vld [vmem:[%s1 + $0x268] sm:$0xff]
  %v185 = vld [vmem:[%s1 + $0x270] sm:$0xff]
  %v186 = vld [vmem:[%s1 + $0x278] sm:$0xff]
  %v187 = vld [vmem:[%s1 + $0x280] sm:$0xff]
  %v188 = vld [vmem:[%s1 + $0x288] sm:$0xff]
  %v189 = vld [vmem:[%s1 + $0x290] sm:$0xff]
  %v190 = vld [vmem:[%s1 + $0x298] sm:$0xff]
  %v191 = vld [vmem:[%s1 + $0x2a0] sm:$0xff]
  %v192 = vld [vmem:[%s1 + $0x2a8] sm:$0xff]
  %v193 = vld [vmem:[%s1 + $0x2b0] sm:$0xff]
  %v194 = vld [vmem:[%s1 + $0x2b8] sm:$0xff]
  %v195 = vld [vmem:[%s1 + $0x2c0] sm:$0xff]
  %v196 = vld [vmem:[%s1 + $0x2c8] sm:$0xff]
  %v197 = vld [vmem:[%s1 + $0x2d0] sm:$0xff]
  %v198 = vld [vmem:[%s1 + $0x2d8] sm:$0xff]
  %v199 = vld [vmem:[%s1 + $0x2e0] sm:$0xff]
  %v200 = vld [vmem:[%s1 + $0x2e8] sm:$0xff]
  %v201 = vld [vmem:[%s1 + $0x2f0] sm:$0xff]
  %v202 = vld [vmem:[%s1 + $0x2f8] sm:$0xff]
  %203 = vmatpush.msra.mxu0 %v137
  %204 = vmatpush.msra.mxu0 %v135
  %205 = vmatpush.msra.mxu0 %v133
  %206 = vmatpush.msra.mxu0 %v131
  %207 = vmatpush.msra.mxu0 %v129
  %208 = vmatpush.msra.mxu0 %v127
  %209 = vmatpush.msra.mxu0 %v125
  %210 = vmatpush.msra.mxu0 %v123
  %211 = vmatpush.msra.mxu0 %v121
  %212 = vmatpush.msra.mxu0 %v119
  %213 = vmatpush.msra.mxu0 %v117
  %214 = vmatpush.msra.mxu0 %v115
  %215 = vmatpush.msra.mxu0 %v113
  %216 = vmatpush.msra.mxu0 %v111
  %217 = vmatpush.msra.mxu0 %v109
  %218 = vmatpush.msra.mxu0 %v107
  %219 = vmatmul.f32.gmra.mxu0 %v11
  %v220 = vpop.f32.mrf.mxu0
  %v221 = vadd.f32 0.0, %v220
  %222 = vmatmul.f32.gmra.mxu0 %v14
  %v223 = vpop.f32.mrf.mxu0
  %v224 = vadd.f32 0.0, %v223
  %225 = vmatmul.f32.gmra.mxu0 %v17
  %v226 = vpop.f32.mrf.mxu0
  %v227 = vadd.f32 0.0, %v226
  %228 = vmatmul.f32.gmra.mxu0 %v20
  %v229 = vpop.f32.mrf.mxu0
  %v230 = vadd.f32 0.0, %v229
  %231 = vmatmul.f32.gmra.mxu0 %v23
  %v232 = vpop.f32.mrf.mxu0
  %v233 = vadd.f32 0.0, %v232
  %234 = vmatmul.f32.gmra.mxu0 %v26
  %v235 = vpop.f32.mrf.mxu0
  %v236 = vadd.f32 0.0, %v235
  %237 = vmatmul.f32.gmra.mxu0 %v29
  %v238 = vpop.f32.mrf.mxu0
  %v239 = vadd.f32 0.0, %v238
  %240 = vmatmul.f32.gmra.mxu0 %v32
  %v241 = vpop.f32.mrf.mxu0
  %v242 = vadd.f32 0.0, %v241
  %243 = vmatmul.f32.gmra.mxu0 %v35
  %v244 = vpop.f32.mrf.mxu0
  %v245 = vadd.f32 0.0, %v244
  %246 = vmatmul.f32.gmra.mxu0 %v38
  %v247 = vpop.f32.mrf.mxu0
  %v248 = vadd.f32 0.0, %v247
  %249 = vmatmul.f32.gmra.mxu0 %v41
  %v250 = vpop.f32.mrf.mxu0
  %v251 = vadd.f32 0.0, %v250
  %252 = vmatmul.f32.gmra.mxu0 %v44
  %v253 = vpop.f32.mrf.mxu0
  %v254 = vadd.f32 0.0, %v253
  %255 = vmatmul.f32.gmra.mxu0 %v47
  %v256 = vpop.f32.mrf.mxu0
  %v257 = vadd.f32 0.0, %v256
  %258 = vmatmul.f32.gmra.mxu0 %v50
  %v259 = vpop.f32.mrf.mxu0
  %v260 = vadd.f32 0.0, %v259
  %261 = vmatmul.f32.gmra.mxu0 %v53
  %v262 = vpop.f32.mrf.mxu0
  %v263 = vadd.f32 0.0, %v262
  %264 = vmatmul.f32.gmra.mxu0 %v56
  %v265 = vpop.f32.mrf.mxu0
  %v266 = vadd.f32 0.0, %v265
  %267 = vmatmul.f32.gmra.mxu0 %v59
  %v268 = vpop.f32.mrf.mxu0
  %v269 = vadd.f32 0.0, %v268
  %270 = vmatmul.f32.gmra.mxu0 %v62
  %v271 = vpop.f32.mrf.mxu0
  %v272 = vadd.f32 0.0, %v271
  %273 = vmatmul.f32.gmra.mxu0 %v65
  %v274 = vpop.f32.mrf.mxu0
  %v275 = vadd.f32 0.0, %v274
  %276 = vmatmul.f32.gmra.mxu0 %v68
  %v277 = vpop.f32.mrf.mxu0
  %v278 = vadd.f32 0.0, %v277
  %279 = vmatmul.f32.gmra.mxu0 %v71
  %v280 = vpop.f32.mrf.mxu0
  %v281 = vadd.f32 0.0, %v280
  %282 = vmatmul.f32.gmra.mxu0 %v74
  %v283 = vpop.f32.mrf.mxu0
  %v284 = vadd.f32 0.0, %v283
  %285 = vmatmul.f32.gmra.mxu0 %v77
  %v286 = vpop.f32.mrf.mxu0
  %v287 = vadd.f32 0.0, %v286
  %288 = vmatmul.f32.gmra.mxu0 %v80
  %v289 = vpop.f32.mrf.mxu0
  %v290 = vadd.f32 0.0, %v289
  %291 = vmatmul.f32.gmra.mxu0 %v83
  %v292 = vpop.f32.mrf.mxu0
  %v293 = vadd.f32 0.0, %v292
  %294 = vmatmul.f32.gmra.mxu0 %v86
  %v295 = vpop.f32.mrf.mxu0
  %v296 = vadd.f32 0.0, %v295
  %297 = vmatmul.f32.gmra.mxu0 %v89
  %v298 = vpop.f32.mrf.mxu0
  %v299 = vadd.f32 0.0, %v298
  %300 = vmatmul.f32.gmra.mxu0 %v92
  %v301 = vpop.f32.mrf.mxu0
  %v302 = vadd.f32 0.0, %v301
  %303 = vmatmul.f32.gmra.mxu0 %v95
  %v304 = vpop.f32.mrf.mxu0
  %v305 = vadd.f32 0.0, %v304
  %306 = vmatmul.f32.gmra.mxu0 %v98
  %v307 = vpop.f32.mrf.mxu0
  %v308 = vadd.f32 0.0, %v307
  %309 = vmatmul.f32.gmra.mxu0 %v101
  %v310 = vpop.f32.mrf.mxu0
  %v311 = vadd.f32 0.0, %v310
  %312 = vmatmul.f32.gmra.mxu0 %v104
  %v313 = vpop.f32.mrf.mxu0
  %v314 = vadd.f32 0.0, %v313
  %315 = vdwg.mxu0
  %316 = vmatpush.msra.mxu0 %v169
  %317 = vmatpush.msra.mxu0 %v167
  %318 = vmatpush.msra.mxu0 %v165
  %319 = vmatpush.msra.mxu0 %v163
  %320 = vmatpush.msra.mxu0 %v161
  %321 = vmatpush.msra.mxu0 %v159
  %322 = vmatpush.msra.mxu0 %v157
  %323 = vmatpush.msra.mxu0 %v155
  %324 = vmatpush.msra.mxu0 %v153
  %325 = vmatpush.msra.mxu0 %v151
  %326 = vmatpush.msra.mxu0 %v149
  %327 = vmatpush.msra.mxu0 %v147
  %328 = vmatpush.msra.mxu0 %v145
  %329 = vmatpush.msra.mxu0 %v143
  %330 = vmatpush.msra.mxu0 %v141
  %331 = vmatpush.msra.mxu0 %v139
  %332 = vmatmul.f32.gmra.mxu0 %v12
  %v333 = vpop.f32.mrf.mxu0
  %v334 = vadd.f32 %v221, %v333
  %335 = vmatmul.f32.gmra.mxu0 %v15
  %v336 = vpop.f32.mrf.mxu0
  %v337 = vadd.f32 %v224, %v336
  %338 = vmatmul.f32.gmra.mxu0 %v18
  %v339 = vpop.f32.mrf.mxu0
  %v340 = vadd.f32 %v227, %v339
  %341 = vmatmul.f32.gmra.mxu0 %v21
  %v342 = vpop.f32.mrf.mxu0
  %v343 = vadd.f32 %v230, %v342
  %344 = vmatmul.f32.gmra.mxu0 %v24
  %v345 = vpop.f32.mrf.mxu0
  %v346 = vadd.f32 %v233, %v345
  %347 = vmatmul.f32.gmra.mxu0 %v27
  %v348 = vpop.f32.mrf.mxu0
  %v349 = vadd.f32 %v236, %v348
  %350 = vmatmul.f32.gmra.mxu0 %v30
  %v351 = vpop.f32.mrf.mxu0
  %v352 = vadd.f32 %v239, %v351
  %353 = vmatmul.f32.gmra.mxu0 %v33
  %v354 = vpop.f32.mrf.mxu0
  %v355 = vadd.f32 %v242, %v354
  %356 = vmatmul.f32.gmra.mxu0 %v36
  %v357 = vpop.f32.mrf.mxu0
  %v358 = vadd.f32 %v245, %v357
  %359 = vmatmul.f32.gmra.mxu0 %v39
  %v360 = vpop.f32.mrf.mxu0
  %v361 = vadd.f32 %v248, %v360
  %362 = vmatmul.f32.gmra.mxu0 %v42
  %v363 = vpop.f32.mrf.mxu0
  %v364 = vadd.f32 %v251, %v363
  %365 = vmatmul.f32.gmra.mxu0 %v45
  %v366 = vpop.f32.mrf.mxu0
  %v367 = vadd.f32 %v254, %v366
  %368 = vmatmul.f32.gmra.mxu0 %v48
  %v369 = vpop.f32.mrf.mxu0
  %v370 = vadd.f32 %v257, %v369
  %371 = vmatmul.f32.gmra.mxu0 %v51
  %v372 = vpop.f32.mrf.mxu0
  %v373 = vadd.f32 %v260, %v372
  %374 = vmatmul.f32.gmra.mxu0 %v54
  %v375 = vpop.f32.mrf.mxu0
  %v376 = vadd.f32 %v263, %v375
  %377 = vmatmul.f32.gmra.mxu0 %v57
  %v378 = vpop.f32.mrf.mxu0
  %v379 = vadd.f32 %v266, %v378
  %380 = vmatmul.f32.gmra.mxu0 %v60
  %v381 = vpop.f32.mrf.mxu0
  %v382 = vadd.f32 %v269, %v381
  %383 = vmatmul.f32.gmra.mxu0 %v63
  %v384 = vpop.f32.mrf.mxu0
  %v385 = vadd.f32 %v272, %v384
  %386 = vmatmul.f32.gmra.mxu0 %v66
  %v387 = vpop.f32.mrf.mxu0
  %v388 = vadd.f32 %v275, %v387
  %389 = vmatmul.f32.gmra.mxu0 %v69
  %v390 = vpop.f32.mrf.mxu0
  %v391 = vadd.f32 %v278, %v390
  %392 = vmatmul.f32.gmra.mxu0 %v72
  %v393 = vpop.f32.mrf.mxu0
  %v394 = vadd.f32 %v281, %v393
  %395 = vmatmul.f32.gmra.mxu0 %v75
  %v396 = vpop.f32.mrf.mxu0
  %v397 = vadd.f32 %v284, %v396
  %398 = vmatmul.f32.gmra.mxu0 %v78
  %v399 = vpop.f32.mrf.mxu0
  %v400 = vadd.f32 %v287, %v399
  %401 = vmatmul.f32.gmra.mxu0 %v81
  %v402 = vpop.f32.mrf.mxu0
  %v403 = vadd.f32 %v290, %v402
  %404 = vmatmul.f32.gmra.mxu0 %v84
  %v405 = vpop.f32.mrf.mxu0
  %v406 = vadd.f32 %v293, %v405
  %407 = vmatmul.f32.gmra.mxu0 %v87
  %v408 = vpop.f32.mrf.mxu0
  %v409 = vadd.f32 %v296, %v408
  %410 = vmatmul.f32.gmra.mxu0 %v90
  %v411 = vpop.f32.mrf.mxu0
  %v412 = vadd.f32 %v299, %v411
  %413 = vmatmul.f32.gmra.mxu0 %v93
  %v414 = vpop.f32.mrf.mxu0
  %v415 = vadd.f32 %v302, %v414
  %416 = vmatmul.f32.gmra.mxu0 %v96
  %v417 = vpop.f32.mrf.mxu0
  %v418 = vadd.f32 %v305, %v417
  %419 = vmatmul.f32.gmra.mxu0 %v99
  %v420 = vpop.f32.mrf.mxu0
  %v421 = vadd.f32 %v308, %v420
  %422 = vmatmul.f32.gmra.mxu0 %v102
  %v423 = vpop.f32.mrf.mxu0
  %v424 = vadd.f32 %v311, %v423
  %425 = vmatmul.f32.gmra.mxu0 %v105
  %v426 = vpop.f32.mrf.mxu0
  %v427 = vadd.f32 %v314, %v426
  %428 = vdwg.mxu0
  %429 = vmatpush.msra.mxu0 %v201
  %430 = vmatpush.msra.mxu0 %v199
  %431 = vmatpush.msra.mxu0 %v197
  %432 = vmatpush.msra.mxu0 %v195
  %433 = vmatpush.msra.mxu0 %v193
  %434 = vmatpush.msra.mxu0 %v191
  %435 = vmatpush.msra.mxu0 %v189
  %436 = vmatpush.msra.mxu0 %v187
  %437 = vmatpush.msra.mxu0 %v185
  %438 = vmatpush.msra.mxu0 %v183
  %439 = vmatpush.msra.mxu0 %v181
  %440 = vmatpush.msra.mxu0 %v179
  %441 = vmatpush.msra.mxu0 %v177
  %442 = vmatpush.msra.mxu0 %v175
  %443 = vmatpush.msra.mxu0 %v173
  %444 = vmatpush.msra.mxu0 %v171
  %445 = vmatmul.f32.gmra.mxu0 %v13
  %v446 = vpop.f32.mrf.mxu0
  %v447 = vadd.f32 %v334, %v446
  %448 = vmatmul.f32.gmra.mxu0 %v16
  %v449 = vpop.f32.mrf.mxu0
  %v450 = vadd.f32 %v337, %v449
  %451 = vmatmul.f32.gmra.mxu0 %v19
  %v452 = vpop.f32.mrf.mxu0
  %v453 = vadd.f32 %v340, %v452
  %454 = vmatmul.f32.gmra.mxu0 %v22
  %v455 = vpop.f32.mrf.mxu0
  %v456 = vadd.f32 %v343, %v455
  %457 = vmatmul.f32.gmra.mxu0 %v25
  %v458 = vpop.f32.mrf.mxu0
  %v459 = vadd.f32 %v346, %v458
  %460 = vmatmul.f32.gmra.mxu0 %v28
  %v461 = vpop.f32.mrf.mxu0
  %v462 = vadd.f32 %v349, %v461
  %463 = vmatmul.f32.gmra.mxu0 %v31
  %v464 = vpop.f32.mrf.mxu0
  %v465 = vadd.f32 %v352, %v464
  %466 = vmatmul.f32.gmra.mxu0 %v34
  %v467 = vpop.f32.mrf.mxu0
  %v468 = vadd.f32 %v355, %v467
  %469 = vmatmul.f32.gmra.mxu0 %v37
  %v470 = vpop.f32.mrf.mxu0
  %v471 = vadd.f32 %v358, %v470
  %472 = vmatmul.f32.gmra.mxu0 %v40
  %v473 = vpop.f32.mrf.mxu0
  %v474 = vadd.f32 %v361, %v473
  %475 = vmatmul.f32.gmra.mxu0 %v43
  %v476 = vpop.f32.mrf.mxu0
  %v477 = vadd.f32 %v364, %v476
  %478 = vmatmul.f32.gmra.mxu0 %v46
  %v479 = vpop.f32.mrf.mxu0
  %v480 = vadd.f32 %v367, %v479
  %481 = vmatmul.f32.gmra.mxu0 %v49
  %v482 = vpop.f32.mrf.mxu0
  %v483 = vadd.f32 %v370, %v482
  %484 = vmatmul.f32.gmra.mxu0 %v52
  %v485 = vpop.f32.mrf.mxu0
  %v486 = vadd.f32 %v373, %v485
  %487 = vmatmul.f32.gmra.mxu0 %v55
  %v488 = vpop.f32.mrf.mxu0
  %v489 = vadd.f32 %v376, %v488
  %490 = vmatmul.f32.gmra.mxu0 %v58
  %v491 = vpop.f32.mrf.mxu0
  %v492 = vadd.f32 %v379, %v491
  %493 = vmatmul.f32.gmra.mxu0 %v61
  %v494 = vpop.f32.mrf.mxu0
  %v495 = vadd.f32 %v382, %v494
  %496 = vmatmul.f32.gmra.mxu0 %v64
  %v497 = vpop.f32.mrf.mxu0
  %v498 = vadd.f32 %v385, %v497
  %499 = vmatmul.f32.gmra.mxu0 %v67
  %v500 = vpop.f32.mrf.mxu0
  %v501 = vadd.f32 %v388, %v500
  %502 = vmatmul.f32.gmra.mxu0 %v70
  %v503 = vpop.f32.mrf.mxu0
  %v504 = vadd.f32 %v391, %v503
  %505 = vmatmul.f32.gmra.mxu0 %v73
  %v506 = vpop.f32.mrf.mxu0
  %v507 = vadd.f32 %v394, %v506
  %508 = vmatmul.f32.gmra.mxu0 %v76
  %v509 = vpop.f32.mrf.mxu0
  %v510 = vadd.f32 %v397, %v509
  %511 = vmatmul.f32.gmra.mxu0 %v79
  %v512 = vpop.f32.mrf.mxu0
  %v513 = vadd.f32 %v400, %v512
  %514 = vmatmul.f32.gmra.mxu0 %v82
  %v515 = vpop.f32.mrf.mxu0
  %v516 = vadd.f32 %v403, %v515
  %517 = vmatmul.f32.gmra.mxu0 %v85
  %v518 = vpop.f32.mrf.mxu0
  %v519 = vadd.f32 %v406, %v518
  %520 = vmatmul.f32.gmra.mxu0 %v88
  %v521 = vpop.f32.mrf.mxu0
  %v522 = vadd.f32 %v409, %v521
  %523 = vmatmul.f32.gmra.mxu0 %v91
  %v524 = vpop.f32.mrf.mxu0
  %v525 = vadd.f32 %v412, %v524
  %526 = vmatmul.f32.gmra.mxu0 %v94
  %v527 = vpop.f32.mrf.mxu0
  %v528 = vadd.f32 %v415, %v527
  %529 = vmatmul.f32.gmra.mxu0 %v97
  %v530 = vpop.f32.mrf.mxu0
  %v531 = vadd.f32 %v418, %v530
  %532 = vmatmul.f32.gmra.mxu0 %v100
  %v533 = vpop.f32.mrf.mxu0
  %v534 = vadd.f32 %v421, %v533
  %535 = vmatmul.f32.gmra.mxu0 %v103
  %v536 = vpop.f32.mrf.mxu0
  %v537 = vadd.f32 %v424, %v536
  %538 = vmatmul.f32.gmra.mxu0 %v106
  %v539 = vpop.f32.mrf.mxu0
  %v540 = vadd.f32 %v427, %v539
  %541 = vdwg.mxu0
  %542 = vmatpush.msra.mxu0 %v138
  %543 = vmatpush.msra.mxu0 %v136
  %544 = vmatpush.msra.mxu0 %v134
  %545 = vmatpush.msra.mxu0 %v132
  %546 = vmatpush.msra.mxu0 %v130
  %547 = vmatpush.msra.mxu0 %v128
  %548 = vmatpush.msra.mxu0 %v126
  %549 = vmatpush.msra.mxu0 %v124
  %550 = vmatpush.msra.mxu0 %v122
  %551 = vmatpush.msra.mxu0 %v120
  %552 = vmatpush.msra.mxu0 %v118
  %553 = vmatpush.msra.mxu0 %v116
  %554 = vmatpush.msra.mxu0 %v114
  %555 = vmatpush.msra.mxu0 %v112
  %556 = vmatpush.msra.mxu0 %v110
  %557 = vmatpush.msra.mxu0 %v108
  %558 = vmatmul.f32.gmra.mxu0 %v11
  %v559 = vpop.f32.mrf.mxu0
  %v560 = vadd.f32 0.0, %v559
  %561 = vmatmul.f32.gmra.mxu0 %v14
  %v562 = vpop.f32.mrf.mxu0
  %v563 = vadd.f32 0.0, %v562
  %564 = vmatmul.f32.gmra.mxu0 %v17
  %v565 = vpop.f32.mrf.mxu0
  %v566 = vadd.f32 0.0, %v565
  %567 = vmatmul.f32.gmra.mxu0 %v20
  %v568 = vpop.f32.mrf.mxu0
  %v569 = vadd.f32 0.0, %v568
  %570 = vmatmul.f32.gmra.mxu0 %v23
  %v571 = vpop.f32.mrf.mxu0
  %v572 = vadd.f32 0.0, %v571
  %573 = vmatmul.f32.gmra.mxu0 %v26
  %v574 = vpop.f32.mrf.mxu0
  %v575 = vadd.f32 0.0, %v574
  %576 = vmatmul.f32.gmra.mxu0 %v29
  %v577 = vpop.f32.mrf.mxu0
  %v578 = vadd.f32 0.0, %v577
  %579 = vmatmul.f32.gmra.mxu0 %v32
  %v580 = vpop.f32.mrf.mxu0
  %v581 = vadd.f32 0.0, %v580
  %582 = vmatmul.f32.gmra.mxu0 %v35
  %v583 = vpop.f32.mrf.mxu0
  %v584 = vadd.f32 0.0, %v583
  %585 = vmatmul.f32.gmra.mxu0 %v38
  %v586 = vpop.f32.mrf.mxu0
  %v587 = vadd.f32 0.0, %v586
  %588 = vmatmul.f32.gmra.mxu0 %v41
  %v589 = vpop.f32.mrf.mxu0
  %v590 = vadd.f32 0.0, %v589
  %591 = vmatmul.f32.gmra.mxu0 %v44
  %v592 = vpop.f32.mrf.mxu0
  %v593 = vadd.f32 0.0, %v592
  %594 = vmatmul.f32.gmra.mxu0 %v47
  %v595 = vpop.f32.mrf.mxu0
  %v596 = vadd.f32 0.0, %v595
  %597 = vmatmul.f32.gmra.mxu0 %v50
  %v598 = vpop.f32.mrf.mxu0
  %v599 = vadd.f32 0.0, %v598
  %600 = vmatmul.f32.gmra.mxu0 %v53
  %v601 = vpop.f32.mrf.mxu0
  %v602 = vadd.f32 0.0, %v601
  %603 = vmatmul.f32.gmra.mxu0 %v56
  %v604 = vpop.f32.mrf.mxu0
  %v605 = vadd.f32 0.0, %v604
  %606 = vmatmul.f32.gmra.mxu0 %v59
  %v607 = vpop.f32.mrf.mxu0
  %v608 = vadd.f32 0.0, %v607
  %609 = vmatmul.f32.gmra.mxu0 %v62
  %v610 = vpop.f32.mrf.mxu0
  %v611 = vadd.f32 0.0, %v610
  %612 = vmatmul.f32.gmra.mxu0 %v65
  %v613 = vpop.f32.mrf.mxu0
  %v614 = vadd.f32 0.0, %v613
  %615 = vmatmul.f32.gmra.mxu0 %v68
  %v616 = vpop.f32.mrf.mxu0
  %v617 = vadd.f32 0.0, %v616
  %618 = vmatmul.f32.gmra.mxu0 %v71
  %v619 = vpop.f32.mrf.mxu0
  %v620 = vadd.f32 0.0, %v619
  %621 = vmatmul.f32.gmra.mxu0 %v74
  %v622 = vpop.f32.mrf.mxu0
  %v623 = vadd.f32 0.0, %v622
  %624 = vmatmul.f32.gmra.mxu0 %v77
  %v625 = vpop.f32.mrf.mxu0
  %v626 = vadd.f32 0.0, %v625
  %627 = vmatmul.f32.gmra.mxu0 %v80
  %v628 = vpop.f32.mrf.mxu0
  %v629 = vadd.f32 0.0, %v628
  %630 = vmatmul.f32.gmra.mxu0 %v83
  %v631 = vpop.f32.mrf.mxu0
  %v632 = vadd.f32 0.0, %v631
  %633 = vmatmul.f32.gmra.mxu0 %v86
  %v634 = vpop.f32.mrf.mxu0
  %v635 = vadd.f32 0.0, %v634
  %636 = vmatmul.f32.gmra.mxu0 %v89
  %v637 = vpop.f32.mrf.mxu0
  %v638 = vadd.f32 0.0, %v637
  %639 = vmatmul.f32.gmra.mxu0 %v92
  %v640 = vpop.f32.mrf.mxu0
  %v641 = vadd.f32 0.0, %v640
  %642 = vmatmul.f32.gmra.mxu0 %v95
  %v643 = vpop.f32.mrf.mxu0
  %v644 = vadd.f32 0.0, %v643
  %645 = vmatmul.f32.gmra.mxu0 %v98
  %v646 = vpop.f32.mrf.mxu0
  %v647 = vadd.f32 0.0, %v646
  %648 = vmatmul.f32.gmra.mxu0 %v101
  %v649 = vpop.f32.mrf.mxu0
  %v650 = vadd.f32 0.0, %v649
  %651 = vmatmul.f32.gmra.mxu0 %v104
  %v652 = vpop.f32.mrf.mxu0
  %v653 = vadd.f32 0.0, %v652
  %654 = vdwg.mxu0
  %655 = vmatpush.msra.mxu0 %v170
  %656 = vmatpush.msra.mxu0 %v168
  %657 = vmatpush.msra.mxu0 %v166
  %658 = vmatpush.msra.mxu0 %v164
  %659 = vmatpush.msra.mxu0 %v162
  %660 = vmatpush.msra.mxu0 %v160
  %661 = vmatpush.msra.mxu0 %v158
  %662 = vmatpush.msra.mxu0 %v156
  %663 = vmatpush.msra.mxu0 %v154
  %664 = vmatpush.msra.mxu0 %v152
  %665 = vmatpush.msra.mxu0 %v150
  %666 = vmatpush.msra.mxu0 %v148
  %667 = vmatpush.msra.mxu0 %v146
  %668 = vmatpush.msra.mxu0 %v144
  %669 = vmatpush.msra.mxu0 %v142
  %670 = vmatpush.msra.mxu0 %v140
  %671 = vmatmul.f32.gmra.mxu0 %v12
  %v672 = vpop.f32.mrf.mxu0
  %v673 = vadd.f32 %v560, %v672
  %674 = vmatmul.f32.gmra.mxu0 %v15
  %v675 = vpop.f32.mrf.mxu0
  %v676 = vadd.f32 %v563, %v675
  %677 = vmatmul.f32.gmra.mxu0 %v18
  %v678 = vpop.f32.mrf.mxu0
  %v679 = vadd.f32 %v566, %v678
  %680 = vmatmul.f32.gmra.mxu0 %v21
  %v681 = vpop.f32.mrf.mxu0
  %v682 = vadd.f32 %v569, %v681
  %683 = vmatmul.f32.gmra.mxu0 %v24
  %v684 = vpop.f32.mrf.mxu0
  %v685 = vadd.f32 %v572, %v684
  %686 = vmatmul.f32.gmra.mxu0 %v27
  %v687 = vpop.f32.mrf.mxu0
  %v688 = vadd.f32 %v575, %v687
  %689 = vmatmul.f32.gmra.mxu0 %v30
  %v690 = vpop.f32.mrf.mxu0
  %v691 = vadd.f32 %v578, %v690
  %692 = vmatmul.f32.gmra.mxu0 %v33
  %v693 = vpop.f32.mrf.mxu0
  %v694 = vadd.f32 %v581, %v693
  %695 = vmatmul.f32.gmra.mxu0 %v36
  %v696 = vpop.f32.mrf.mxu0
  %v697 = vadd.f32 %v584, %v696
  %698 = vmatmul.f32.gmra.mxu0 %v39
  %v699 = vpop.f32.mrf.mxu0
  %v700 = vadd.f32 %v587, %v699
  %701 = vmatmul.f32.gmra.mxu0 %v42
  %v702 = vpop.f32.mrf.mxu0
  %v703 = vadd.f32 %v590, %v702
  %704 = vmatmul.f32.gmra.mxu0 %v45
  %v705 = vpop.f32.mrf.mxu0
  %v706 = vadd.f32 %v593, %v705
  %707 = vmatmul.f32.gmra.mxu0 %v48
  %v708 = vpop.f32.mrf.mxu0
  %v709 = vadd.f32 %v596, %v708
  %710 = vmatmul.f32.gmra.mxu0 %v51
  %v711 = vpop.f32.mrf.mxu0
  %v712 = vadd.f32 %v599, %v711
  %713 = vmatmul.f32.gmra.mxu0 %v54
  %v714 = vpop.f32.mrf.mxu0
  %v715 = vadd.f32 %v602, %v714
  %716 = vmatmul.f32.gmra.mxu0 %v57
  %v717 = vpop.f32.mrf.mxu0
  %v718 = vadd.f32 %v605, %v717
  %719 = vmatmul.f32.gmra.mxu0 %v60
  %v720 = vpop.f32.mrf.mxu0
  %v721 = vadd.f32 %v608, %v720
  %722 = vmatmul.f32.gmra.mxu0 %v63
  %v723 = vpop.f32.mrf.mxu0
  %v724 = vadd.f32 %v611, %v723
  %725 = vmatmul.f32.gmra.mxu0 %v66
  %v726 = vpop.f32.mrf.mxu0
  %v727 = vadd.f32 %v614, %v726
  %728 = vmatmul.f32.gmra.mxu0 %v69
  %v729 = vpop.f32.mrf.mxu0
  %v730 = vadd.f32 %v617, %v729
  %731 = vmatmul.f32.gmra.mxu0 %v72
  %v732 = vpop.f32.mrf.mxu0
  %v733 = vadd.f32 %v620, %v732
  %734 = vmatmul.f32.gmra.mxu0 %v75
  %v735 = vpop.f32.mrf.mxu0
  %v736 = vadd.f32 %v623, %v735
  %737 = vmatmul.f32.gmra.mxu0 %v78
  %v738 = vpop.f32.mrf.mxu0
  %v739 = vadd.f32 %v626, %v738
  %740 = vmatmul.f32.gmra.mxu0 %v81
  %v741 = vpop.f32.mrf.mxu0
  %v742 = vadd.f32 %v629, %v741
  %743 = vmatmul.f32.gmra.mxu0 %v84
  %v744 = vpop.f32.mrf.mxu0
  %v745 = vadd.f32 %v632, %v744
  %746 = vmatmul.f32.gmra.mxu0 %v87
  %v747 = vpop.f32.mrf.mxu0
  %v748 = vadd.f32 %v635, %v747
  %749 = vmatmul.f32.gmra.mxu0 %v90
  %v750 = vpop.f32.mrf.mxu0
  %v751 = vadd.f32 %v638, %v750
  %752 = vmatmul.f32.gmra.mxu0 %v93
  %v753 = vpop.f32.mrf.mxu0
  %v754 = vadd.f32 %v641, %v753
  %755 = vmatmul.f32.gmra.mxu0 %v96
  %v756 = vpop.f32.mrf.mxu0
  %v757 = vadd.f32 %v644, %v756
  %758 = vmatmul.f32.gmra.mxu0 %v99
  %v759 = vpop.f32.mrf.mxu0
  %v760 = vadd.f32 %v647, %v759
  %761 = vmatmul.f32.gmra.mxu0 %v102
  %v762 = vpop.f32.mrf.mxu0
  %v763 = vadd.f32 %v650, %v762
  %764 = vmatmul.f32.gmra.mxu0 %v105
  %v765 = vpop.f32.mrf.mxu0
  %v766 = vadd.f32 %v653, %v765
  %767 = vdwg.mxu0
  %768 = vmatpush.msra.mxu0 %v202
  %769 = vmatpush.msra.mxu0 %v200
  %770 = vmatpush.msra.mxu0 %v198
  %771 = vmatpush.msra.mxu0 %v196
  %772 = vmatpush.msra.mxu0 %v194
  %773 = vmatpush.msra.mxu0 %v192
  %774 = vmatpush.msra.mxu0 %v190
  %775 = vmatpush.msra.mxu0 %v188
  %776 = vmatpush.msra.mxu0 %v186
  %777 = vmatpush.msra.mxu0 %v184
  %778 = vmatpush.msra.mxu0 %v182
  %779 = vmatpush.msra.mxu0 %v180
  %780 = vmatpush.msra.mxu0 %v178
  %781 = vmatpush.msra.mxu0 %v176
  %782 = vmatpush.msra.mxu0 %v174
  %783 = vmatpush.msra.mxu0 %v172
  %784 = vmatmul.f32.gmra.mxu0 %v13
  %v785 = vpop.f32.mrf.mxu0
  %v786 = vadd.f32 %v673, %v785
  %787 = vmatmul.f32.gmra.mxu0 %v16
  %v788 = vpop.f32.mrf.mxu0
  %v789 = vadd.f32 %v676, %v788
  %790 = vmatmul.f32.gmra.mxu0 %v19
  %v791 = vpop.f32.mrf.mxu0
  %v792 = vadd.f32 %v679, %v791
  %793 = vmatmul.f32.gmra.mxu0 %v22
  %v794 = vpop.f32.mrf.mxu0
  %v795 = vadd.f32 %v682, %v794
  %796 = vmatmul.f32.gmra.mxu0 %v25
  %v797 = vpop.f32.mrf.mxu0
  %v798 = vadd.f32 %v685, %v797
  %799 = vmatmul.f32.gmra.mxu0 %v28
  %v800 = vpop.f32.mrf.mxu0
  %v801 = vadd.f32 %v688, %v800
  %802 = vmatmul.f32.gmra.mxu0 %v31
  %v803 = vpop.f32.mrf.mxu0
  %v804 = vadd.f32 %v691, %v803
  %805 = vmatmul.f32.gmra.mxu0 %v34
  %v806 = vpop.f32.mrf.mxu0
  %v807 = vadd.f32 %v694, %v806
  %808 = vmatmul.f32.gmra.mxu0 %v37
  %v809 = vpop.f32.mrf.mxu0
  %v810 = vadd.f32 %v697, %v809
  %811 = vmatmul.f32.gmra.mxu0 %v40
  %v812 = vpop.f32.mrf.mxu0
  %v813 = vadd.f32 %v700, %v812
  %814 = vmatmul.f32.gmra.mxu0 %v43
  %v815 = vpop.f32.mrf.mxu0
  %v816 = vadd.f32 %v703, %v815
  %817 = vmatmul.f32.gmra.mxu0 %v46
  %v818 = vpop.f32.mrf.mxu0
  %v819 = vadd.f32 %v706, %v818
  %820 = vmatmul.f32.gmra.mxu0 %v49
  %v821 = vpop.f32.mrf.mxu0
  %v822 = vadd.f32 %v709, %v821
  %823 = vmatmul.f32.gmra.mxu0 %v52
  %v824 = vpop.f32.mrf.mxu0
  %v825 = vadd.f32 %v712, %v824
  %826 = vmatmul.f32.gmra.mxu0 %v55
  %v827 = vpop.f32.mrf.mxu0
  %v828 = vadd.f32 %v715, %v827
  %829 = vmatmul.f32.gmra.mxu0 %v58
  %v830 = vpop.f32.mrf.mxu0
  %v831 = vadd.f32 %v718, %v830
  %832 = vmatmul.f32.gmra.mxu0 %v61
  %v833 = vpop.f32.mrf.mxu0
  %v834 = vadd.f32 %v721, %v833
  %835 = vmatmul.f32.gmra.mxu0 %v64
  %v836 = vpop.f32.mrf.mxu0
  %v837 = vadd.f32 %v724, %v836
  %838 = vmatmul.f32.gmra.mxu0 %v67
  %v839 = vpop.f32.mrf.mxu0
  %v840 = vadd.f32 %v727, %v839
  %841 = vmatmul.f32.gmra.mxu0 %v70
  %v842 = vpop.f32.mrf.mxu0
  %v843 = vadd.f32 %v730, %v842
  %844 = vmatmul.f32.gmra.mxu0 %v73
  %v845 = vpop.f32.mrf.mxu0
  %v846 = vadd.f32 %v733, %v845
  %847 = vmatmul.f32.gmra.mxu0 %v76
  %v848 = vpop.f32.mrf.mxu0
  %v849 = vadd.f32 %v736, %v848
  %850 = vmatmul.f32.gmra.mxu0 %v79
  %v851 = vpop.f32.mrf.mxu0
  %v852 = vadd.f32 %v739, %v851
  %853 = vmatmul.f32.gmra.mxu0 %v82
  %v854 = vpop.f32.mrf.mxu0
  %v855 = vadd.f32 %v742, %v854
  %856 = vmatmul.f32.gmra.mxu0 %v85
  %v857 = vpop.f32.mrf.mxu0
  %v858 = vadd.f32 %v745, %v857
  %859 = vmatmul.f32.gmra.mxu0 %v88
  %v860 = vpop.f32.mrf.mxu0
  %v861 = vadd.f32 %v748, %v860
  %862 = vmatmul.f32.gmra.mxu0 %v91
  %v863 = vpop.f32.mrf.mxu0
  %v864 = vadd.f32 %v751, %v863
  %865 = vmatmul.f32.gmra.mxu0 %v94
  %v866 = vpop.f32.mrf.mxu0
  %v867 = vadd.f32 %v754, %v866
  %868 = vmatmul.f32.gmra.mxu0 %v97
  %v869 = vpop.f32.mrf.mxu0
  %v870 = vadd.f32 %v757, %v869
  %871 = vmatmul.f32.gmra.mxu0 %v100
  %v872 = vpop.f32.mrf.mxu0
  %v873 = vadd.f32 %v760, %v872
  %874 = vmatmul.f32.gmra.mxu0 %v103
  %v875 = vpop.f32.mrf.mxu0
  %v876 = vadd.f32 %v763, %v875
  %877 = vmatmul.f32.gmra.mxu0 %v106
  %v878 = vpop.f32.mrf.mxu0
  %v879 = vadd.f32 %v766, %v878
  %880 = vdwg.mxu0
  %897 = vrot.lane.b32.xlu0 %v447, 64
  %v898 = vpop.permute.xlu0 %897
  %899 = vrot.lane.b32.xlu0 %v450, 64
  %v900 = vpop.permute.xlu0 %899
  %901 = vrot.lane.b32.xlu0 %v453, 64
  %v902 = vpop.permute.xlu0 %901
  %903 = vrot.lane.b32.xlu0 %v456, 64
  %v904 = vpop.permute.xlu0 %903
  %905 = vrot.lane.b32.xlu0 %v459, 64
  %v906 = vpop.permute.xlu0 %905
  %907 = vrot.lane.b32.xlu0 %v462, 64
  %v908 = vpop.permute.xlu0 %907
  %909 = vrot.lane.b32.xlu0 %v465, 64
  %v910 = vpop.permute.xlu0 %909
  %911 = vrot.lane.b32.xlu0 %v468, 64
  %v912 = vpop.permute.xlu0 %911
  %913 = vrot.lane.b32.xlu0 %v471, 64
  %v914 = vpop.permute.xlu0 %913
  %915 = vrot.lane.b32.xlu0 %v474, 64
  %v916 = vpop.permute.xlu0 %915
  %917 = vrot.lane.b32.xlu0 %v477, 64
  %v918 = vpop.permute.xlu0 %917
  %919 = vrot.lane.b32.xlu0 %v480, 64
  %v920 = vpop.permute.xlu0 %919
  %921 = vrot.lane.b32.xlu0 %v483, 64
  %v922 = vpop.permute.xlu0 %921
  %923 = vrot.lane.b32.xlu0 %v486, 64
  %v924 = vpop.permute.xlu0 %923
  %925 = vrot.lane.b32.xlu0 %v489, 64
  %v926 = vpop.permute.xlu0 %925
  %927 = vrot.lane.b32.xlu0 %v492, 64
  %v928 = vpop.permute.xlu0 %927
  %vm929 = vcmask 523264
  %v930 = vsel %vm929, %v898, 0
  %v932 = vsel %vm929, %v900, 0
  %v934 = vsel %vm929, %v902, 0
  %v936 = vsel %vm929, %v904, 0
  %v938 = vsel %vm929, %v906, 0
  %v940 = vsel %vm929, %v908, 0
  %v942 = vsel %vm929, %v910, 0
  %v944 = vsel %vm929, %v912, 0
  %v946 = vsel %vm929, %v914, 0
  %v948 = vsel %vm929, %v916, 0
  %v950 = vsel %vm929, %v918, 0
  %v952 = vsel %vm929, %v920, 0
  %v954 = vsel %vm929, %v922, 0
  %v956 = vsel %vm929, %v924, 0
  %v958 = vsel %vm929, %v926, 0
  %v960 = vsel %vm929, %v928, 0
  %v962 = vsel %vm929, %v447, 0
  %v964 = vsel %vm929, %v450, 0
  %v966 = vsel %vm929, %v453, 0
  %v968 = vsel %vm929, %v456, 0
  %v970 = vsel %vm929, %v459, 0
  %v972 = vsel %vm929, %v462, 0
  %v974 = vsel %vm929, %v465, 0
  %v976 = vsel %vm929, %v468, 0
  %v978 = vsel %vm929, %v471, 0
  %v980 = vsel %vm929, %v474, 0
  %v982 = vsel %vm929, %v477, 0
  %v984 = vsel %vm929, %v480, 0
  %v986 = vsel %vm929, %v483, 0
  %v988 = vsel %vm929, %v486, 0
  %v990 = vsel %vm929, %v489, 0
  %v992 = vsel %vm929, %v492, 0
  %994 = vmatpush.xpose.msra.mxu0 %v992
  %995 = vmatpush.xpose.msra.mxu0 %v990
  %996 = vmatpush.xpose.msra.mxu0 %v988
  %997 = vmatpush.xpose.msra.mxu0 %v986
  %998 = vmatpush.xpose.msra.mxu0 %v984
  %999 = vmatpush.xpose.msra.mxu0 %v982
  %1000 = vmatpush.xpose.msra.mxu0 %v980
  %1001 = vmatpush.xpose.msra.mxu0 %v978
  %1002 = vmatpush.xpose.msra.mxu0 %v976
  %1003 = vmatpush.xpose.msra.mxu0 %v974
  %1004 = vmatpush.xpose.msra.mxu0 %v972
  %1005 = vmatpush.xpose.msra.mxu0 %v970
  %1006 = vmatpush.xpose.msra.mxu0 %v968
  %1007 = vmatpush.xpose.msra.mxu0 %v966
  %1008 = vmatpush.xpose.msra.mxu0 %v964
  %1009 = vmatpush.xpose.msra.mxu0 %v962
  %1010 = vmatmul.f32.gmra.mxu0 %v930
  %v1011 = vpop.f32.mrf.mxu0
  %v1012 = vadd.f32 0.0, %v1011
  %1013 = vmatmul.f32.gmra.mxu0 %v932
  %v1014 = vpop.f32.mrf.mxu0
  %v1015 = vadd.f32 0.0, %v1014
  %1016 = vmatmul.f32.gmra.mxu0 %v934
  %v1017 = vpop.f32.mrf.mxu0
  %v1018 = vadd.f32 0.0, %v1017
  %1019 = vmatmul.f32.gmra.mxu0 %v936
  %v1020 = vpop.f32.mrf.mxu0
  %v1021 = vadd.f32 0.0, %v1020
  %1022 = vmatmul.f32.gmra.mxu0 %v938
  %v1023 = vpop.f32.mrf.mxu0
  %v1024 = vadd.f32 0.0, %v1023
  %1025 = vmatmul.f32.gmra.mxu0 %v940
  %v1026 = vpop.f32.mrf.mxu0
  %v1027 = vadd.f32 0.0, %v1026
  %1028 = vmatmul.f32.gmra.mxu0 %v942
  %v1029 = vpop.f32.mrf.mxu0
  %v1030 = vadd.f32 0.0, %v1029
  %1031 = vmatmul.f32.gmra.mxu0 %v944
  %v1032 = vpop.f32.mrf.mxu0
  %v1033 = vadd.f32 0.0, %v1032
  %1034 = vmatmul.f32.gmra.mxu0 %v946
  %v1035 = vpop.f32.mrf.mxu0
  %v1036 = vadd.f32 0.0, %v1035
  %1037 = vmatmul.f32.gmra.mxu0 %v948
  %v1038 = vpop.f32.mrf.mxu0
  %v1039 = vadd.f32 0.0, %v1038
  %1040 = vmatmul.f32.gmra.mxu0 %v950
  %v1041 = vpop.f32.mrf.mxu0
  %v1042 = vadd.f32 0.0, %v1041
  %1043 = vmatmul.f32.gmra.mxu0 %v952
  %v1044 = vpop.f32.mrf.mxu0
  %v1045 = vadd.f32 0.0, %v1044
  %1046 = vmatmul.f32.gmra.mxu0 %v954
  %v1047 = vpop.f32.mrf.mxu0
  %v1048 = vadd.f32 0.0, %v1047
  %1049 = vmatmul.f32.gmra.mxu0 %v956
  %v1050 = vpop.f32.mrf.mxu0
  %v1051 = vadd.f32 0.0, %v1050
  %1052 = vmatmul.f32.gmra.mxu0 %v958
  %v1053 = vpop.f32.mrf.mxu0
  %v1054 = vadd.f32 0.0, %v1053
  %1055 = vmatmul.f32.gmra.mxu0 %v960
  %v1056 = vpop.f32.mrf.mxu0
  %v1057 = vadd.f32 0.0, %v1056
  %1058 = vdwg.mxu0
  %1075 = vrot.lane.b32.xlu0 %v495, 64
  %v1076 = vpop.permute.xlu0 %1075
  %1077 = vrot.lane.b32.xlu0 %v498, 64
  %v1078 = vpop.permute.xlu0 %1077
  %1079 = vrot.lane.b32.xlu0 %v501, 64
  %v1080 = vpop.permute.xlu0 %1079
  %1081 = vrot.lane.b32.xlu0 %v504, 64
  %v1082 = vpop.permute.xlu0 %1081
  %1083 = vrot.lane.b32.xlu0 %v507, 64
  %v1084 = vpop.permute.xlu0 %1083
  %1085 = vrot.lane.b32.xlu0 %v510, 64
  %v1086 = vpop.permute.xlu0 %1085
  %1087 = vrot.lane.b32.xlu0 %v513, 64
  %v1088 = vpop.permute.xlu0 %1087
  %1089 = vrot.lane.b32.xlu0 %v516, 64
  %v1090 = vpop.permute.xlu0 %1089
  %1091 = vrot.lane.b32.xlu0 %v519, 64
  %v1092 = vpop.permute.xlu0 %1091
  %1093 = vrot.lane.b32.xlu0 %v522, 64
  %v1094 = vpop.permute.xlu0 %1093
  %1095 = vrot.lane.b32.xlu0 %v525, 64
  %v1096 = vpop.permute.xlu0 %1095
  %1097 = vrot.lane.b32.xlu0 %v528, 64
  %v1098 = vpop.permute.xlu0 %1097
  %1099 = vrot.lane.b32.xlu0 %v531, 64
  %v1100 = vpop.permute.xlu0 %1099
  %1101 = vrot.lane.b32.xlu0 %v534, 64
  %v1102 = vpop.permute.xlu0 %1101
  %1103 = vrot.lane.b32.xlu0 %v537, 64
  %v1104 = vpop.permute.xlu0 %1103
  %1105 = vrot.lane.b32.xlu0 %v540, 64
  %v1106 = vpop.permute.xlu0 %1105
  %v1107 = vsel %vm929, %v1076, 0
  %v1109 = vsel %vm929, %v1078, 0
  %v1111 = vsel %vm929, %v1080, 0
  %v1113 = vsel %vm929, %v1082, 0
  %v1115 = vsel %vm929, %v1084, 0
  %v1117 = vsel %vm929, %v1086, 0
  %v1119 = vsel %vm929, %v1088, 0
  %v1121 = vsel %vm929, %v1090, 0
  %v1123 = vsel %vm929, %v1092, 0
  %v1125 = vsel %vm929, %v1094, 0
  %v1127 = vsel %vm929, %v1096, 0
  %v1129 = vsel %vm929, %v1098, 0
  %v1131 = vsel %vm929, %v1100, 0
  %v1133 = vsel %vm929, %v1102, 0
  %v1135 = vsel %vm929, %v1104, 0
  %v1137 = vsel %vm929, %v1106, 0
  %v1139 = vsel %vm929, %v495, 0
  %v1141 = vsel %vm929, %v498, 0
  %v1143 = vsel %vm929, %v501, 0
  %v1145 = vsel %vm929, %v504, 0
  %v1147 = vsel %vm929, %v507, 0
  %v1149 = vsel %vm929, %v510, 0
  %v1151 = vsel %vm929, %v513, 0
  %v1153 = vsel %vm929, %v516, 0
  %v1155 = vsel %vm929, %v519, 0
  %v1157 = vsel %vm929, %v522, 0
  %v1159 = vsel %vm929, %v525, 0
  %v1161 = vsel %vm929, %v528, 0
  %v1163 = vsel %vm929, %v531, 0
  %v1165 = vsel %vm929, %v534, 0
  %v1167 = vsel %vm929, %v537, 0
  %v1169 = vsel %vm929, %v540, 0
  %1171 = vmatpush.xpose.msra.mxu0 %v1169
  %1172 = vmatpush.xpose.msra.mxu0 %v1167
  %1173 = vmatpush.xpose.msra.mxu0 %v1165
  %1174 = vmatpush.xpose.msra.mxu0 %v1163
  %1175 = vmatpush.xpose.msra.mxu0 %v1161
  %1176 = vmatpush.xpose.msra.mxu0 %v1159
  %1177 = vmatpush.xpose.msra.mxu0 %v1157
  %1178 = vmatpush.xpose.msra.mxu0 %v1155
  %1179 = vmatpush.xpose.msra.mxu0 %v1153
  %1180 = vmatpush.xpose.msra.mxu0 %v1151
  %1181 = vmatpush.xpose.msra.mxu0 %v1149
  %1182 = vmatpush.xpose.msra.mxu0 %v1147
  %1183 = vmatpush.xpose.msra.mxu0 %v1145
  %1184 = vmatpush.xpose.msra.mxu0 %v1143
  %1185 = vmatpush.xpose.msra.mxu0 %v1141
  %1186 = vmatpush.xpose.msra.mxu0 %v1139
  %1187 = vmatmul.f32.gmra.mxu0 %v1107
  %v1188 = vpop.f32.mrf.mxu0
  %v1189 = vadd.f32 0.0, %v1188
  %1190 = vmatmul.f32.gmra.mxu0 %v1109
  %v1191 = vpop.f32.mrf.mxu0
  %v1192 = vadd.f32 0.0, %v1191
  %1193 = vmatmul.f32.gmra.mxu0 %v1111
  %v1194 = vpop.f32.mrf.mxu0
  %v1195 = vadd.f32 0.0, %v1194
  %1196 = vmatmul.f32.gmra.mxu0 %v1113
  %v1197 = vpop.f32.mrf.mxu0
  %v1198 = vadd.f32 0.0, %v1197
  %1199 = vmatmul.f32.gmra.mxu0 %v1115
  %v1200 = vpop.f32.mrf.mxu0
  %v1201 = vadd.f32 0.0, %v1200
  %1202 = vmatmul.f32.gmra.mxu0 %v1117
  %v1203 = vpop.f32.mrf.mxu0
  %v1204 = vadd.f32 0.0, %v1203
  %1205 = vmatmul.f32.gmra.mxu0 %v1119
  %v1206 = vpop.f32.mrf.mxu0
  %v1207 = vadd.f32 0.0, %v1206
  %1208 = vmatmul.f32.gmra.mxu0 %v1121
  %v1209 = vpop.f32.mrf.mxu0
  %v1210 = vadd.f32 0.0, %v1209
  %1211 = vmatmul.f32.gmra.mxu0 %v1123
  %v1212 = vpop.f32.mrf.mxu0
  %v1213 = vadd.f32 0.0, %v1212
  %1214 = vmatmul.f32.gmra.mxu0 %v1125
  %v1215 = vpop.f32.mrf.mxu0
  %v1216 = vadd.f32 0.0, %v1215
  %1217 = vmatmul.f32.gmra.mxu0 %v1127
  %v1218 = vpop.f32.mrf.mxu0
  %v1219 = vadd.f32 0.0, %v1218
  %1220 = vmatmul.f32.gmra.mxu0 %v1129
  %v1221 = vpop.f32.mrf.mxu0
  %v1222 = vadd.f32 0.0, %v1221
  %1223 = vmatmul.f32.gmra.mxu0 %v1131
  %v1224 = vpop.f32.mrf.mxu0
  %v1225 = vadd.f32 0.0, %v1224
  %1226 = vmatmul.f32.gmra.mxu0 %v1133
  %v1227 = vpop.f32.mrf.mxu0
  %v1228 = vadd.f32 0.0, %v1227
  %1229 = vmatmul.f32.gmra.mxu0 %v1135
  %v1230 = vpop.f32.mrf.mxu0
  %v1231 = vadd.f32 0.0, %v1230
  %1232 = vmatmul.f32.gmra.mxu0 %v1137
  %v1233 = vpop.f32.mrf.mxu0
  %v1234 = vadd.f32 0.0, %v1233
  %1235 = vdwg.mxu0
  %v1236 = vlaneseq
  %v1237 = vshrl.u32 %v1236, 7
  %v1238 = vadd.s32 %v1237, 8
  %v1239 = vadd.s32 %v1237, 16
  %v1240 = vadd.s32 %v1237, 24
  %v1241 = vadd.s32 %v1237, 32
  %v1242 = vadd.s32 %v1237, 40
  %v1243 = vadd.s32 %v1237, 48
  %v1244 = vadd.s32 %v1237, 56
  %v1245 = vadd.s32 %v1237, 64
  %v1246 = vadd.s32 %v1237, 72
  %v1247 = vadd.s32 %v1237, 80
  %v1248 = vadd.s32 %v1237, 88
  %v1249 = vadd.s32 %v1237, 96
  %v1250 = vadd.s32 %v1237, 104
  %v1251 = vadd.s32 %v1237, 112
  %v1252 = vadd.s32 %v1237, 120
  %v1253 = vlaneseq
  %v1254 = vand.u32 %v1253, 127
  %vm1255 = vcmp.le.s32.totalorder %v1254, %v1237
  %vm1256 = vcmp.le.s32.totalorder %v1254, %v1238
  %vm1257 = vcmp.le.s32.totalorder %v1254, %v1239
  %vm1258 = vcmp.le.s32.totalorder %v1254, %v1240
  %vm1259 = vcmp.le.s32.totalorder %v1254, %v1241
  %vm1260 = vcmp.le.s32.totalorder %v1254, %v1242
  %vm1261 = vcmp.le.s32.totalorder %v1254, %v1243
  %vm1262 = vcmp.le.s32.totalorder %v1254, %v1244
  %vm1263 = vcmp.le.s32.totalorder %v1254, %v1245
  %vm1264 = vcmp.le.s32.totalorder %v1254, %v1246
  %vm1265 = vcmp.le.s32.totalorder %v1254, %v1247
  %vm1266 = vcmp.le.s32.totalorder %v1254, %v1248
  %vm1267 = vcmp.le.s32.totalorder %v1254, %v1249
  %vm1268 = vcmp.le.s32.totalorder %v1254, %v1250
  %vm1269 = vcmp.le.s32.totalorder %v1254, %v1251
  %vm1270 = vcmp.le.s32.totalorder %v1254, %v1252
  %v1271 = vsel %vm1255, 1, 0
  %v1272 = vsel %vm1256, 1, 0
  %v1273 = vsel %vm1257, 1, 0
  %v1274 = vsel %vm1258, 1, 0
  %v1275 = vsel %vm1259, 1, 0
  %v1276 = vsel %vm1260, 1, 0
  %v1277 = vsel %vm1261, 1, 0
  %v1278 = vsel %vm1262, 1, 0
  %v1279 = vsel %vm1263, 1, 0
  %v1280 = vsel %vm1264, 1, 0
  %v1281 = vsel %vm1265, 1, 0
  %v1282 = vsel %vm1266, 1, 0
  %v1283 = vsel %vm1267, 1, 0
  %v1284 = vsel %vm1268, 1, 0
  %v1285 = vsel %vm1269, 1, 0
  %v1286 = vsel %vm1270, 1, 0
  %vm1287 = vcmp.eq.s32.totalorder %v1271, 1
  %vm1288 = vcmp.eq.s32.totalorder %v1272, 1
  %vm1289 = vcmp.eq.s32.totalorder %v1273, 1
  %vm1290 = vcmp.eq.s32.totalorder %v1274, 1
  %vm1291 = vcmp.eq.s32.totalorder %v1275, 1
  %vm1292 = vcmp.eq.s32.totalorder %v1276, 1
  %vm1293 = vcmp.eq.s32.totalorder %v1277, 1
  %vm1294 = vcmp.eq.s32.totalorder %v1278, 1
  %vm1295 = vcmp.eq.s32.totalorder %v1279, 1
  %vm1296 = vcmp.eq.s32.totalorder %v1280, 1
  %vm1297 = vcmp.eq.s32.totalorder %v1281, 1
  %vm1298 = vcmp.eq.s32.totalorder %v1282, 1
  %vm1299 = vcmp.eq.s32.totalorder %v1283, 1
  %vm1300 = vcmp.eq.s32.totalorder %v1284, 1
  %vm1301 = vcmp.eq.s32.totalorder %v1285, 1
  %vm1302 = vcmp.eq.s32.totalorder %v1286, 1
  %v1303 = vsel %vm1287, %v1012, -inf
  %v1304 = vsel %vm1288, %v1015, -inf
  %v1305 = vsel %vm1289, %v1018, -inf
  %v1306 = vsel %vm1290, %v1021, -inf
  %v1307 = vsel %vm1291, %v1024, -inf
  %v1308 = vsel %vm1292, %v1027, -inf
  %v1309 = vsel %vm1293, %v1030, -inf
  %v1310 = vsel %vm1294, %v1033, -inf
  %v1311 = vsel %vm1295, %v1036, -inf
  %v1312 = vsel %vm1296, %v1039, -inf
  %v1313 = vsel %vm1297, %v1042, -inf
  %v1314 = vsel %vm1298, %v1045, -inf
  %v1315 = vsel %vm1299, %v1048, -inf
  %v1316 = vsel %vm1300, %v1051, -inf
  %v1317 = vsel %vm1301, %v1054, -inf
  %v1318 = vsel %vm1302, %v1057, -inf
  %v1319 = vsel %vm1287, %v1189, -inf
  %v1320 = vsel %vm1288, %v1192, -inf
  %v1321 = vsel %vm1289, %v1195, -inf
  %v1322 = vsel %vm1290, %v1198, -inf
  %v1323 = vsel %vm1291, %v1201, -inf
  %v1324 = vsel %vm1292, %v1204, -inf
  %v1325 = vsel %vm1293, %v1207, -inf
  %v1326 = vsel %vm1294, %v1210, -inf
  %v1327 = vsel %vm1295, %v1213, -inf
  %v1328 = vsel %vm1296, %v1216, -inf
  %v1329 = vsel %vm1297, %v1219, -inf
  %v1330 = vsel %vm1298, %v1222, -inf
  %v1331 = vsel %vm1299, %v1225, -inf
  %v1332 = vsel %vm1300, %v1228, -inf
  %v1333 = vsel %vm1301, %v1231, -inf
  %v1334 = vsel %vm1302, %v1234, -inf
  %1335 = vmax.xlane.f32.xlu0 %v1303
  %v1336 = vpop.xlane.xlu0 %1335
  %1337 = vmax.xlane.f32.xlu0 %v1304
  %v1338 = vpop.xlane.xlu0 %1337
  %1339 = vmax.xlane.f32.xlu0 %v1305
  %v1340 = vpop.xlane.xlu0 %1339
  %1341 = vmax.xlane.f32.xlu0 %v1306
  %v1342 = vpop.xlane.xlu0 %1341
  %1343 = vmax.xlane.f32.xlu0 %v1307
  %v1344 = vpop.xlane.xlu0 %1343
  %1345 = vmax.xlane.f32.xlu0 %v1308
  %v1346 = vpop.xlane.xlu0 %1345
  %1347 = vmax.xlane.f32.xlu0 %v1309
  %v1348 = vpop.xlane.xlu0 %1347
  %1349 = vmax.xlane.f32.xlu0 %v1310
  %v1350 = vpop.xlane.xlu0 %1349
  %1351 = vmax.xlane.f32.xlu0 %v1311
  %v1352 = vpop.xlane.xlu0 %1351
  %1353 = vmax.xlane.f32.xlu0 %v1312
  %v1354 = vpop.xlane.xlu0 %1353
  %1355 = vmax.xlane.f32.xlu0 %v1313
  %v1356 = vpop.xlane.xlu0 %1355
  %1357 = vmax.xlane.f32.xlu0 %v1314
  %v1358 = vpop.xlane.xlu0 %1357
  %1359 = vmax.xlane.f32.xlu0 %v1315
  %v1360 = vpop.xlane.xlu0 %1359
  %1361 = vmax.xlane.f32.xlu0 %v1316
  %v1362 = vpop.xlane.xlu0 %1361
  %1363 = vmax.xlane.f32.xlu0 %v1317
  %v1364 = vpop.xlane.xlu0 %1363
  %1365 = vmax.xlane.f32.xlu0 %v1318
  %v1366 = vpop.xlane.xlu0 %1365
  %1367 = vmax.xlane.f32.xlu0 %v1319
  %v1368 = vpop.xlane.xlu0 %1367
  %1369 = vmax.xlane.f32.xlu0 %v1320
  %v1370 = vpop.xlane.xlu0 %1369
  %1371 = vmax.xlane.f32.xlu0 %v1321
  %v1372 = vpop.xlane.xlu0 %1371
  %1373 = vmax.xlane.f32.xlu0 %v1322
  %v1374 = vpop.xlane.xlu0 %1373
  %1375 = vmax.xlane.f32.xlu0 %v1323
  %v1376 = vpop.xlane.xlu0 %1375
  %1377 = vmax.xlane.f32.xlu0 %v1324
  %v1378 = vpop.xlane.xlu0 %1377
  %1379 = vmax.xlane.f32.xlu0 %v1325
  %v1380 = vpop.xlane.xlu0 %1379
  %1381 = vmax.xlane.f32.xlu0 %v1326
  %v1382 = vpop.xlane.xlu0 %1381
  %1383 = vmax.xlane.f32.xlu0 %v1327
  %v1384 = vpop.xlane.xlu0 %1383
  %1385 = vmax.xlane.f32.xlu0 %v1328
  %v1386 = vpop.xlane.xlu0 %1385
  %1387 = vmax.xlane.f32.xlu0 %v1329
  %v1388 = vpop.xlane.xlu0 %1387
  %1389 = vmax.xlane.f32.xlu0 %v1330
  %v1390 = vpop.xlane.xlu0 %1389
  %1391 = vmax.xlane.f32.xlu0 %v1331
  %v1392 = vpop.xlane.xlu0 %1391
  %1393 = vmax.xlane.f32.xlu0 %v1332
  %v1394 = vpop.xlane.xlu0 %1393
  %1395 = vmax.xlane.f32.xlu0 %v1333
  %v1396 = vpop.xlane.xlu0 %1395
  %1397 = vmax.xlane.f32.xlu0 %v1334
  %v1398 = vpop.xlane.xlu0 %1397
  %v1399 = vsub.f32 %v1303, %v1336
  %v1400 = vsub.f32 %v1304, %v1338
  %v1401 = vsub.f32 %v1305, %v1340
  %v1402 = vsub.f32 %v1306, %v1342
  %v1403 = vsub.f32 %v1307, %v1344
  %v1404 = vsub.f32 %v1308, %v1346
  %v1405 = vsub.f32 %v1309, %v1348
  %v1406 = vsub.f32 %v1310, %v1350
  %v1407 = vsub.f32 %v1311, %v1352
  %v1408 = vsub.f32 %v1312, %v1354
  %v1409 = vsub.f32 %v1313, %v1356
  %v1410 = vsub.f32 %v1314, %v1358
  %v1411 = vsub.f32 %v1315, %v1360
  %v1412 = vsub.f32 %v1316, %v1362
  %v1413 = vsub.f32 %v1317, %v1364
  %v1414 = vsub.f32 %v1318, %v1366
  %v1415 = vsub.f32 %v1319, %v1368
  %v1416 = vsub.f32 %v1320, %v1370
  %v1417 = vsub.f32 %v1321, %v1372
  %v1418 = vsub.f32 %v1322, %v1374
  %v1419 = vsub.f32 %v1323, %v1376
  %v1420 = vsub.f32 %v1324, %v1378
  %v1421 = vsub.f32 %v1325, %v1380
  %v1422 = vsub.f32 %v1326, %v1382
  %v1423 = vsub.f32 %v1327, %v1384
  %v1424 = vsub.f32 %v1328, %v1386
  %v1425 = vsub.f32 %v1329, %v1388
  %v1426 = vsub.f32 %v1330, %v1390
  %v1427 = vsub.f32 %v1331, %v1392
  %v1428 = vsub.f32 %v1332, %v1394
  %v1429 = vsub.f32 %v1333, %v1396
  %v1430 = vsub.f32 %v1334, %v1398
  %v1431 = vmul.f32 %v1399, 1.442695
  %v1432 = vpow.pop %v1431
  %v1433 = vmul.f32 %v1400, 1.442695
  %v1434 = vpow.pop %v1433
  %v1435 = vmul.f32 %v1401, 1.442695
  %v1436 = vpow.pop %v1435
  %v1437 = vmul.f32 %v1402, 1.442695
  %v1438 = vpow.pop %v1437
  %v1439 = vmul.f32 %v1403, 1.442695
  %v1440 = vpow.pop %v1439
  %v1441 = vmul.f32 %v1404, 1.442695
  %v1442 = vpow.pop %v1441
  %v1443 = vmul.f32 %v1405, 1.442695
  %v1444 = vpow.pop %v1443
  %v1445 = vmul.f32 %v1406, 1.442695
  %v1446 = vpow.pop %v1445
  %v1447 = vmul.f32 %v1407, 1.442695
  %v1448 = vpow.pop %v1447
  %v1449 = vmul.f32 %v1408, 1.442695
  %v1450 = vpow.pop %v1449
  %v1451 = vmul.f32 %v1409, 1.442695
  %v1452 = vpow.pop %v1451
  %v1453 = vmul.f32 %v1410, 1.442695
  %v1454 = vpow.pop %v1453
  %v1455 = vmul.f32 %v1411, 1.442695
  %v1456 = vpow.pop %v1455
  %v1457 = vmul.f32 %v1412, 1.442695
  %v1458 = vpow.pop %v1457
  %v1459 = vmul.f32 %v1413, 1.442695
  %v1460 = vpow.pop %v1459
  %v1461 = vmul.f32 %v1414, 1.442695
  %v1462 = vpow.pop %v1461
  %v1463 = vmul.f32 %v1415, 1.442695
  %v1464 = vpow.pop %v1463
  %v1465 = vmul.f32 %v1416, 1.442695
  %v1466 = vpow.pop %v1465
  %v1467 = vmul.f32 %v1417, 1.442695
  %v1468 = vpow.pop %v1467
  %v1469 = vmul.f32 %v1418, 1.442695
  %v1470 = vpow.pop %v1469
  %v1471 = vmul.f32 %v1419, 1.442695
  %v1472 = vpow.pop %v1471
  %v1473 = vmul.f32 %v1420, 1.442695
  %v1474 = vpow.pop %v1473
  %v1475 = vmul.f32 %v1421, 1.442695
  %v1476 = vpow.pop %v1475
  %v1477 = vmul.f32 %v1422, 1.442695
  %v1478 = vpow.pop %v1477
  %v1479 = vmul.f32 %v1423, 1.442695
  %v1480 = vpow.pop %v1479
  %v1481 = vmul.f32 %v1424, 1.442695
  %v1482 = vpow.pop %v1481
  %v1483 = vmul.f32 %v1425, 1.442695
  %v1484 = vpow.pop %v1483
  %v1485 = vmul.f32 %v1426, 1.442695
  %v1486 = vpow.pop %v1485
  %v1487 = vmul.f32 %v1427, 1.442695
  %v1488 = vpow.pop %v1487
  %v1489 = vmul.f32 %v1428, 1.442695
  %v1490 = vpow.pop %v1489
  %v1491 = vmul.f32 %v1429, 1.442695
  %v1492 = vpow.pop %v1491
  %v1493 = vmul.f32 %v1430, 1.442695
  %v1494 = vpow.pop %v1493
  %1495 = vadd.xlane.f32.xlu0 %v1432
  %v1496 = vpop.xlane.xlu0 %1495
  %1497 = vadd.xlane.f32.xlu0 %v1434
  %v1498 = vpop.xlane.xlu0 %1497
  %1499 = vadd.xlane.f32.xlu0 %v1436
  %v1500 = vpop.xlane.xlu0 %1499
  %1501 = vadd.xlane.f32.xlu0 %v1438
  %v1502 = vpop.xlane.xlu0 %1501
  %1503 = vadd.xlane.f32.xlu0 %v1440
  %v1504 = vpop.xlane.xlu0 %1503
  %1505 = vadd.xlane.f32.xlu0 %v1442
  %v1506 = vpop.xlane.xlu0 %1505
  %1507 = vadd.xlane.f32.xlu0 %v1444
  %v1508 = vpop.xlane.xlu0 %1507
  %1509 = vadd.xlane.f32.xlu0 %v1446
  %v1510 = vpop.xlane.xlu0 %1509
  %1511 = vadd.xlane.f32.xlu0 %v1448
  %v1512 = vpop.xlane.xlu0 %1511
  %1513 = vadd.xlane.f32.xlu0 %v1450
  %v1514 = vpop.xlane.xlu0 %1513
  %1515 = vadd.xlane.f32.xlu0 %v1452
  %v1516 = vpop.xlane.xlu0 %1515
  %1517 = vadd.xlane.f32.xlu0 %v1454
  %v1518 = vpop.xlane.xlu0 %1517
  %1519 = vadd.xlane.f32.xlu0 %v1456
  %v1520 = vpop.xlane.xlu0 %1519
  %1521 = vadd.xlane.f32.xlu0 %v1458
  %v1522 = vpop.xlane.xlu0 %1521
  %1523 = vadd.xlane.f32.xlu0 %v1460
  %v1524 = vpop.xlane.xlu0 %1523
  %1525 = vadd.xlane.f32.xlu0 %v1462
  %v1526 = vpop.xlane.xlu0 %1525
  %1527 = vadd.xlane.f32.xlu0 %v1464
  %v1528 = vpop.xlane.xlu0 %1527
  %1529 = vadd.xlane.f32.xlu0 %v1466
  %v1530 = vpop.xlane.xlu0 %1529
  %1531 = vadd.xlane.f32.xlu0 %v1468
  %v1532 = vpop.xlane.xlu0 %1531
  %1533 = vadd.xlane.f32.xlu0 %v1470
  %v1534 = vpop.xlane.xlu0 %1533
  %1535 = vadd.xlane.f32.xlu0 %v1472
  %v1536 = vpop.xlane.xlu0 %1535
  %1537 = vadd.xlane.f32.xlu0 %v1474
  %v1538 = vpop.xlane.xlu0 %1537
  %1539 = vadd.xlane.f32.xlu0 %v1476
  %v1540 = vpop.xlane.xlu0 %1539
  %1541 = vadd.xlane.f32.xlu0 %v1478
  %v1542 = vpop.xlane.xlu0 %1541
  %1543 = vadd.xlane.f32.xlu0 %v1480
  %v1544 = vpop.xlane.xlu0 %1543
  %1545 = vadd.xlane.f32.xlu0 %v1482
  %v1546 = vpop.xlane.xlu0 %1545
  %1547 = vadd.xlane.f32.xlu0 %v1484
  %v1548 = vpop.xlane.xlu0 %1547
  %1549 = vadd.xlane.f32.xlu0 %v1486
  %v1550 = vpop.xlane.xlu0 %1549
  %1551 = vadd.xlane.f32.xlu0 %v1488
  %v1552 = vpop.xlane.xlu0 %1551
  %1553 = vadd.xlane.f32.xlu0 %v1490
  %v1554 = vpop.xlane.xlu0 %1553
  %1555 = vadd.xlane.f32.xlu0 %v1492
  %v1556 = vpop.xlane.xlu0 %1555
  %1557 = vadd.xlane.f32.xlu0 %v1494
  %v1558 = vpop.xlane.xlu0 %1557
  %1559 = vmatpush.msra.mxu0 %v831
  %1560 = vmatpush.msra.mxu0 %v828
  %1561 = vmatpush.msra.mxu0 %v825
  %1562 = vmatpush.msra.mxu0 %v822
  %1563 = vmatpush.msra.mxu0 %v819
  %1564 = vmatpush.msra.mxu0 %v816
  %1565 = vmatpush.msra.mxu0 %v813
  %1566 = vmatpush.msra.mxu0 %v810
  %1567 = vmatpush.msra.mxu0 %v807
  %1568 = vmatpush.msra.mxu0 %v804
  %1569 = vmatpush.msra.mxu0 %v801
  %1570 = vmatpush.msra.mxu0 %v798
  %1571 = vmatpush.msra.mxu0 %v795
  %1572 = vmatpush.msra.mxu0 %v792
  %1573 = vmatpush.msra.mxu0 %v789
  %1574 = vmatpush.msra.mxu0 %v786
  %1575 = vmatmul.f32.gmra.mxu0 %v1432
  %v1576 = vpop.f32.mrf.mxu0
  %v1577 = vadd.f32 0.0, %v1576
  %1578 = vmatmul.f32.gmra.mxu0 %v1434
  %v1579 = vpop.f32.mrf.mxu0
  %v1580 = vadd.f32 0.0, %v1579
  %1581 = vmatmul.f32.gmra.mxu0 %v1436
  %v1582 = vpop.f32.mrf.mxu0
  %v1583 = vadd.f32 0.0, %v1582
  %1584 = vmatmul.f32.gmra.mxu0 %v1438
  %v1585 = vpop.f32.mrf.mxu0
  %v1586 = vadd.f32 0.0, %v1585
  %1587 = vmatmul.f32.gmra.mxu0 %v1440
  %v1588 = vpop.f32.mrf.mxu0
  %v1589 = vadd.f32 0.0, %v1588
  %1590 = vmatmul.f32.gmra.mxu0 %v1442
  %v1591 = vpop.f32.mrf.mxu0
  %v1592 = vadd.f32 0.0, %v1591
  %1593 = vmatmul.f32.gmra.mxu0 %v1444
  %v1594 = vpop.f32.mrf.mxu0
  %v1595 = vadd.f32 0.0, %v1594
  %1596 = vmatmul.f32.gmra.mxu0 %v1446
  %v1597 = vpop.f32.mrf.mxu0
  %v1598 = vadd.f32 0.0, %v1597
  %1599 = vmatmul.f32.gmra.mxu0 %v1448
  %v1600 = vpop.f32.mrf.mxu0
  %v1601 = vadd.f32 0.0, %v1600
  %1602 = vmatmul.f32.gmra.mxu0 %v1450
  %v1603 = vpop.f32.mrf.mxu0
  %v1604 = vadd.f32 0.0, %v1603
  %1605 = vmatmul.f32.gmra.mxu0 %v1452
  %v1606 = vpop.f32.mrf.mxu0
  %v1607 = vadd.f32 0.0, %v1606
  %1608 = vmatmul.f32.gmra.mxu0 %v1454
  %v1609 = vpop.f32.mrf.mxu0
  %v1610 = vadd.f32 0.0, %v1609
  %1611 = vmatmul.f32.gmra.mxu0 %v1456
  %v1612 = vpop.f32.mrf.mxu0
  %v1613 = vadd.f32 0.0, %v1612
  %1614 = vmatmul.f32.gmra.mxu0 %v1458
  %v1615 = vpop.f32.mrf.mxu0
  %v1616 = vadd.f32 0.0, %v1615
  %1617 = vmatmul.f32.gmra.mxu0 %v1460
  %v1618 = vpop.f32.mrf.mxu0
  %v1619 = vadd.f32 0.0, %v1618
  %1620 = vmatmul.f32.gmra.mxu0 %v1462
  %v1621 = vpop.f32.mrf.mxu0
  %v1622 = vadd.f32 0.0, %v1621
  %1623 = vdwg.mxu0
  %1624 = vmatpush.msra.mxu0 %v879
  %1625 = vmatpush.msra.mxu0 %v876
  %1626 = vmatpush.msra.mxu0 %v873
  %1627 = vmatpush.msra.mxu0 %v870
  %1628 = vmatpush.msra.mxu0 %v867
  %1629 = vmatpush.msra.mxu0 %v864
  %1630 = vmatpush.msra.mxu0 %v861
  %1631 = vmatpush.msra.mxu0 %v858
  %1632 = vmatpush.msra.mxu0 %v855
  %1633 = vmatpush.msra.mxu0 %v852
  %1634 = vmatpush.msra.mxu0 %v849
  %1635 = vmatpush.msra.mxu0 %v846
  %1636 = vmatpush.msra.mxu0 %v843
  %1637 = vmatpush.msra.mxu0 %v840
  %1638 = vmatpush.msra.mxu0 %v837
  %1639 = vmatpush.msra.mxu0 %v834
  %1640 = vmatmul.f32.gmra.mxu0 %v1464
  %v1641 = vpop.f32.mrf.mxu0
  %v1642 = vadd.f32 0.0, %v1641
  %1643 = vmatmul.f32.gmra.mxu0 %v1466
  %v1644 = vpop.f32.mrf.mxu0
  %v1645 = vadd.f32 0.0, %v1644
  %1646 = vmatmul.f32.gmra.mxu0 %v1468
  %v1647 = vpop.f32.mrf.mxu0
  %v1648 = vadd.f32 0.0, %v1647
  %1649 = vmatmul.f32.gmra.mxu0 %v1470
  %v1650 = vpop.f32.mrf.mxu0
  %v1651 = vadd.f32 0.0, %v1650
  %1652 = vmatmul.f32.gmra.mxu0 %v1472
  %v1653 = vpop.f32.mrf.mxu0
  %v1654 = vadd.f32 0.0, %v1653
  %1655 = vmatmul.f32.gmra.mxu0 %v1474
  %v1656 = vpop.f32.mrf.mxu0
  %v1657 = vadd.f32 0.0, %v1656
  %1658 = vmatmul.f32.gmra.mxu0 %v1476
  %v1659 = vpop.f32.mrf.mxu0
  %v1660 = vadd.f32 0.0, %v1659
  %1661 = vmatmul.f32.gmra.mxu0 %v1478
  %v1662 = vpop.f32.mrf.mxu0
  %v1663 = vadd.f32 0.0, %v1662
  %1664 = vmatmul.f32.gmra.mxu0 %v1480
  %v1665 = vpop.f32.mrf.mxu0
  %v1666 = vadd.f32 0.0, %v1665
  %1667 = vmatmul.f32.gmra.mxu0 %v1482
  %v1668 = vpop.f32.mrf.mxu0
  %v1669 = vadd.f32 0.0, %v1668
  %1670 = vmatmul.f32.gmra.mxu0 %v1484
  %v1671 = vpop.f32.mrf.mxu0
  %v1672 = vadd.f32 0.0, %v1671
  %1673 = vmatmul.f32.gmra.mxu0 %v1486
  %v1674 = vpop.f32.mrf.mxu0
  %v1675 = vadd.f32 0.0, %v1674
  %1676 = vmatmul.f32.gmra.mxu0 %v1488
  %v1677 = vpop.f32.mrf.mxu0
  %v1678 = vadd.f32 0.0, %v1677
  %1679 = vmatmul.f32.gmra.mxu0 %v1490
  %v1680 = vpop.f32.mrf.mxu0
  %v1681 = vadd.f32 0.0, %v1680
  %1682 = vmatmul.f32.gmra.mxu0 %v1492
  %v1683 = vpop.f32.mrf.mxu0
  %v1684 = vadd.f32 0.0, %v1683
  %1685 = vmatmul.f32.gmra.mxu0 %v1494
  %v1686 = vpop.f32.mrf.mxu0
  %v1687 = vadd.f32 0.0, %v1686
  %1688 = vdwg.mxu0
  %v1689 = vrcp.pop %v1496
  %v1690 = vrcp.pop %v1498
  %v1691 = vrcp.pop %v1500
  %v1692 = vrcp.pop %v1502
  %v1693 = vrcp.pop %v1504
  %v1694 = vrcp.pop %v1506
  %v1695 = vrcp.pop %v1508
  %v1696 = vrcp.pop %v1510
  %v1697 = vrcp.pop %v1512
  %v1698 = vrcp.pop %v1514
  %v1699 = vrcp.pop %v1516
  %v1700 = vrcp.pop %v1518
  %v1701 = vrcp.pop %v1520
  %v1702 = vrcp.pop %v1522
  %v1703 = vrcp.pop %v1524
  %v1704 = vrcp.pop %v1526
  %v1705 = vrcp.pop %v1528
  %v1706 = vrcp.pop %v1530
  %v1707 = vrcp.pop %v1532
  %v1708 = vrcp.pop %v1534
  %v1709 = vrcp.pop %v1536
  %v1710 = vrcp.pop %v1538
  %v1711 = vrcp.pop %v1540
  %v1712 = vrcp.pop %v1542
  %v1713 = vrcp.pop %v1544
  %v1714 = vrcp.pop %v1546
  %v1715 = vrcp.pop %v1548
  %v1716 = vrcp.pop %v1550
  %v1717 = vrcp.pop %v1552
  %v1718 = vrcp.pop %v1554
  %v1719 = vrcp.pop %v1556
  %v1720 = vrcp.pop %v1558
  %v1721 = vmul.f32 %v1577, %v1689
  %v1722 = vmul.f32 %v1580, %v1690
  %v1723 = vmul.f32 %v1583, %v1691
  %v1724 = vmul.f32 %v1586, %v1692
  %v1725 = vmul.f32 %v1589, %v1693
  %v1726 = vmul.f32 %v1592, %v1694
  %v1727 = vmul.f32 %v1595, %v1695
  %v1728 = vmul.f32 %v1598, %v1696
  %v1729 = vmul.f32 %v1601, %v1697
  %v1730 = vmul.f32 %v1604, %v1698
  %v1731 = vmul.f32 %v1607, %v1699
  %v1732 = vmul.f32 %v1610, %v1700
  %v1733 = vmul.f32 %v1613, %v1701
  %v1734 = vmul.f32 %v1616, %v1702
  %v1735 = vmul.f32 %v1619, %v1703
  %v1736 = vmul.f32 %v1622, %v1704
  %v1737 = vmul.f32 %v1642, %v1705
  %v1738 = vmul.f32 %v1645, %v1706
  %v1739 = vmul.f32 %v1648, %v1707
  %v1740 = vmul.f32 %v1651, %v1708
  %v1741 = vmul.f32 %v1654, %v1709
  %v1742 = vmul.f32 %v1657, %v1710
  %v1743 = vmul.f32 %v1660, %v1711
  %v1744 = vmul.f32 %v1663, %v1712
  %v1745 = vmul.f32 %v1666, %v1713
  %v1746 = vmul.f32 %v1669, %v1714
  %v1747 = vmul.f32 %v1672, %v1715
  %v1748 = vmul.f32 %v1675, %v1716
  %v1749 = vmul.f32 %v1678, %v1717
  %v1750 = vmul.f32 %v1681, %v1718
  %v1751 = vmul.f32 %v1684, %v1719
  %v1752 = vmul.f32 %v1687, %v1720
  %1753 = vst.msk [vmem:[%s2] sm:$0xff] %vm929, %v1721
  %1754 = vst.msk [vmem:[%s2 + $0x8] sm:$0xff] %vm929, %v1722
  %1755 = vst.msk [vmem:[%s2 + $0x10] sm:$0xff] %vm929, %v1723
  %1756 = vst.msk [vmem:[%s2 + $0x18] sm:$0xff] %vm929, %v1724
  %1757 = vst.msk [vmem:[%s2 + $0x20] sm:$0xff] %vm929, %v1725
  %1758 = vst.msk [vmem:[%s2 + $0x28] sm:$0xff] %vm929, %v1726
  %1759 = vst.msk [vmem:[%s2 + $0x30] sm:$0xff] %vm929, %v1727
  %1760 = vst.msk [vmem:[%s2 + $0x38] sm:$0xff] %vm929, %v1728
  %1761 = vst.msk [vmem:[%s2 + $0x40] sm:$0xff] %vm929, %v1729
  %1762 = vst.msk [vmem:[%s2 + $0x48] sm:$0xff] %vm929, %v1730
  %1763 = vst.msk [vmem:[%s2 + $0x50] sm:$0xff] %vm929, %v1731
  %1764 = vst.msk [vmem:[%s2 + $0x58] sm:$0xff] %vm929, %v1732
  %1765 = vst.msk [vmem:[%s2 + $0x60] sm:$0xff] %vm929, %v1733
  %1766 = vst.msk [vmem:[%s2 + $0x68] sm:$0xff] %vm929, %v1734
  %1767 = vst.msk [vmem:[%s2 + $0x70] sm:$0xff] %vm929, %v1735
  %1768 = vst.msk [vmem:[%s2 + $0x78] sm:$0xff] %vm929, %v1736
  %1769 = vst.msk [vmem:[%s2 + $0x80] sm:$0xff] %vm929, %v1737
  %1770 = vst.msk [vmem:[%s2 + $0x88] sm:$0xff] %vm929, %v1738
  %1771 = vst.msk [vmem:[%s2 + $0x90] sm:$0xff] %vm929, %v1739
  %1772 = vst.msk [vmem:[%s2 + $0x98] sm:$0xff] %vm929, %v1740
  %1773 = vst.msk [vmem:[%s2 + $0xa0] sm:$0xff] %vm929, %v1741
  %1774 = vst.msk [vmem:[%s2 + $0xa8] sm:$0xff] %vm929, %v1742
  %1775 = vst.msk [vmem:[%s2 + $0xb0] sm:$0xff] %vm929, %v1743
  %1776 = vst.msk [vmem:[%s2 + $0xb8] sm:$0xff] %vm929, %v1744
  %1777 = vst.msk [vmem:[%s2 + $0xc0] sm:$0xff] %vm929, %v1745
  %1778 = vst.msk [vmem:[%s2 + $0xc8] sm:$0xff] %vm929, %v1746
  %1779 = vst.msk [vmem:[%s2 + $0xd0] sm:$0xff] %vm929, %v1747
  %1780 = vst.msk [vmem:[%s2 + $0xd8] sm:$0xff] %vm929, %v1748
  %1781 = vst.msk [vmem:[%s2 + $0xe0] sm:$0xff] %vm929, %v1749
  %1782 = vst.msk [vmem:[%s2 + $0xe8] sm:$0xff] %vm929, %v1750
  %1783 = vst.msk [vmem:[%s2 + $0xf0] sm:$0xff] %vm929, %v1751
  %1784 = vst.msk [vmem:[%s2 + $0xf8] sm:$0xff] %vm929, %v1752
  // Predicated region
  $region10: #{tpu_custom_call.1} parent=0 // pred_check
    _
  $region11: #{tpu_custom_call.1} parent=0 // pred_check_branch
    %1786 = sbr.rel (0) target = $region13
  $region12: #{tpu_custom_call.1} parent=0 // pred_region
    _
  $region13: #{tpu_custom_call.1} parent=0 // pred_fallthru
    _
  // Predicated region
  $region14: #{tpu_custom_call.1} parent=0 // pred_check
    _
  $region15: #{tpu_custom_call.1} parent=0 // pred_check_branch
    %1788 = sbr.rel (0) target = $region17
  $region16: #{tpu_custom_call.1} parent=0 // pred_region
    _
  $region17: #{tpu_custom_call.1} parent=0 // pred_fallthru
    _

</llo_original>
